<compile_context>
chip_gen: v7x
topology: tpu7x:2x2x1
jax: 0.10.0
libtpu: 0.0.40
codegen_flags: <defaults>
</compile_context>

<pallas_src>
import jax
import jax.numpy as jnp
import numpy as np
from jax.experimental import pallas as pl
from jax.experimental.pallas import tpu as pltpu

_INV_SQRT_2 = 0.7071067811865476
_HALO = 16        # halo block sublane count (bf16-friendly, divides 2*tile_t2)
_TILE_CAP = 512   # max conv2-output rows per grid step (keeps GELU temps small)


def _gelu_exact_f32(x):
    """torch.nn.GELU() default: 0.5*x*(1 + erf(x/sqrt(2))).

    erf via Abramowitz & Stegun 7.1.26 (|abs err| < 2e-7).  The reciprocal and
    exp go to the EUP slot so the VPU only sees a handful of mul/adds.
    """
    z = jnp.abs(x) * _INV_SQRT_2
    t = pl.reciprocal(1.0 + 0.3275911 * z, approx=True)
    poly = ((((1.061405429 * t - 1.453152027) * t + 1.421413741) * t
             - 0.284496736) * t + 0.254829592) * t
    erf_abs = 1.0 - poly * jnp.exp(-z * z)
    erf = jnp.where(x < 0.0, -erf_abs, erf_abs)
    return 0.5 * x * (1.0 + erf)


def _round_up(x, m):
    return ((x + m - 1) // m) * m


def _vmem_capacity_bytes():
    try:
        return int(pltpu.get_tpu_info().vmem_capacity_bytes)
    except Exception:
        return 64 * 1024 * 1024   # conservative fallback = v7x per-core VMEM


def _pick_tile_t2(T2, idim, odim_p, elt, budget_bytes):
    """#conv2-output rows per grid step such that the working set fits VMEM."""
    idim_v = max(_round_up(idim, 128), 128)     # physical lane padding
    # Constant-index blocks are still double-buffered by the pipeline.
    # TODO(synk): single-buffer them with pipeline_mode=pl.Buffered(1).
    fixed = (2 * (3 * idim + 3 * odim_p) * odim_p * elt   # w1k + w2k, 2 buffers
             + 2 * 2 * odim_p * 4                         # biases (f32)
             + 2 * _HALO * idim_v * elt)                  # halo blocks
    per_row = (4 * idim_v * elt        # x main block (2 buffers, 2 rows/T2-row)
               + 2 * odim_p * elt      # output block (2 buffers, conservative)
               + 8 * idim_v            # f32 window staging scratch (2 rows)
               + 2 * idim_v * elt      # xe + xo deinterleaved scratches
               + 2 * odim_p * elt      # ys scratch (2*odim_p lanes)
               + 24 * odim_p)          # f32 matmul accumulators + GELU temps
    avail = max(budget_bytes - fixed, 16 * per_row)
    tile = (avail // per_row // 16) * 16
    tile = max(16, min(_TILE_CAP, tile))
    return int(min(tile, _round_up(T2, 8)))


def _make_kernel(tile_t2, idim, odim, odim_p, cdt):
    ne = tile_t2 + 1     # even conv1 rows produced per tile
    no = tile_t2         # odd  conv1 rows produced per tile

    def kernel(xm_ref, xh_ref, w1_ref, b1_ref, w2_ref, b2_ref, o_ref,
               xw_ref, xe_ref, xo_ref, ys_ref):
        # xm_ref : (1, 2*tile_t2, idim)  main x window block (input dtype)
        # xh_ref : (1, _HALO, idim)      halo block; only first 3 rows used
        # w1_ref : (3*idim, odim_p)      conv1 weights, taps-major
        # w2_ref : (3*odim_p, odim_p)    conv2 weights, taps-major
        # b*_ref : (1, odim_p)           f32 biases (zero padded)
        # o_ref  : (1, tile_t2, odim)
        # xw_ref : (2*tile_t2+8, idim)   f32 contiguous window staging
        # xe_ref : (>=tile_t2+2, idim)   window even rows (compute dtype)
        # xo_ref : (>=tile_t2+1, idim)   window odd rows  (compute dtype)
        # ys_ref : (>=tile_t2+1, 2*odim_p)  [GELU(conv1) even | odd] rows
        f32 = jnp.float32

        # --- 0. stage the window (main rows + 3 halo rows) contiguously -----
        xw_ref[pl.ds(0, 2 * tile_t2), :] = xm_ref[0].astype(f32)
        xw_ref[pl.ds(2 * tile_t2, 3), :] = xh_ref[0][:3, :].astype(f32)

        # --- 1. deinterleave into even / odd rows (only strided access) -----
        xe_ref[pl.ds(0, tile_t2 + 2), :] = (
            xw_ref[pl.ds(0, tile_t2 + 2, stride=2), :].astype(cdt))
        xo_ref[pl.ds(0, tile_t2 + 1), :] = (
            xw_ref[pl.ds(1, tile_t2 + 1, stride=2), :].astype(cdt))

        w1_t0 = w1_ref[0:idim, :]
        w1_t1 = w1_ref[idim:2 * idim, :]
        w1_t2 = w1_ref[2 * idim:3 * idim, :]

        # --- 2. conv1 + GELU, even conv1 rows:
        #        ye[p] = xe[p] W0 + xo[p] W1 + xe[p+1] W2 ,  p = 0..tile_t2 ---
        acc_e = jnp.dot(xe_ref[pl.ds(0, ne), :], w1_t0,
                        preferred_element_type=f32)
        acc_e += jnp.dot(xo_ref[pl.ds(0, ne), :], w1_t1,
                         preferred_element_type=f32)
        acc_e += jnp.dot(xe_ref[pl.ds(1, ne), :], w1_t2,
                         preferred_element_type=f32)
        ys_ref[pl.ds(0, ne), pl.ds(0, odim_p)] = (
            _gelu_exact_f32(acc_e + b1_ref[...]).astype(cdt))

        # --- 3. conv1 + GELU, odd conv1 rows:
        #        yo[p] = xo[p] W0 + xe[p+1] W1 + xo[p+1] W2 , p = 0..tile_t2-1
        acc_o = jnp.dot(xo_ref[pl.ds(0, no), :], w1_t0,
                        preferred_element_type=f32)
        acc_o += jnp.dot(xe_ref[pl.ds(1, no), :], w1_t1,
                         preferred_element_type=f32)
        acc_o += jnp.dot(xo_ref[pl.ds(1, no), :], w1_t2,
                         preferred_element_type=f32)
        ys_ref[pl.ds(0, no), pl.ds(odim_p, odim_p)] = (
            _gelu_exact_f32(acc_o + b1_ref[...]).astype(cdt))

        # --- 4. conv2 (stride 2 is baked into the even/odd layout):
        #        o[j] = ye[j] V0 + yo[j] V1 + ye[j+1] V2
        #        fused as [ye[j] | yo[j]] @ [V0; V1]  +  ye[j+1] @ V2 ---------
        acc2 = jnp.dot(ys_ref[pl.ds(0, tile_t2), :],
                       w2_ref[0:2 * odim_p, :],
                       preferred_element_type=f32)
        acc2 += jnp.dot(ys_ref[pl.ds(1, tile_t2), pl.ds(0, odim_p)],
                        w2_ref[2 * odim_p:3 * odim_p, :],
                        preferred_element_type=f32)
        res = _gelu_exact_f32(acc2 + b2_ref[...])
        if odim != odim_p:
            res = res[:, :odim]
        o_ref[0] = res.astype(o_ref.dtype)

    return kernel


@jax.jit
def gxl_conv1d_subsampling2(x, w1, b1, w2, b2):
    """x: (B, T, idim); w1: (odim, idim, 3); b1: (odim,);
       w2: (odim, odim, 3); b2: (odim,).  Returns (B, T2, odim) in x.dtype."""
    B, T, idim = x.shape
    odim = w1.shape[0]
    if T < 5:
        raise ValueError(f"GxlConv1dSubsampling2 needs T >= 5 (got T={T})")
    T1 = T - 2
    T2 = (T1 - 3) // 2 + 1

    cdt = x.dtype                  # MXU operand dtype (bf16 input -> fast path)
    elt = x.dtype.itemsize
    odim_p = _round_up(odim, 128)  # internal channel padding only

    cap = _vmem_capacity_bytes()
    tile_t2 = _pick_tile_t2(T2, idim, odim_p, elt, cap // 2)
    assert tile_t2 % 8 == 0 and (2 * tile_t2) % _HALO == 0
    nt = (T2 + tile_t2 - 1) // tile_t2

    halo_blk = (2 * tile_t2) // _HALO   # halo block index stride per time tile
    h_max = (T - 1) // _HALO            # clamp so the halo never starts OOB

    # Taps-major (k, cin, cout) weights, channel padded, flattened to 2-D.
    w1k = jnp.transpose(w1, (2, 1, 0)).astype(cdt)            # (3, idim, odim)
    w1k = jnp.pad(w1k, ((0, 0), (0, 0), (0, odim_p - odim)))
    w1k = w1k.reshape(3 * idim, odim_p)
    w2k = jnp.transpose(w2, (2, 1, 0)).astype(cdt)            # (3, odim, odim)
    w2k = jnp.pad(w2k, ((0, 0), (0, odim_p - odim), (0, odim_p - odim)))
    w2k = w2k.reshape(3 * odim_p, odim_p)
    b1k = jnp.pad(b1.astype(jnp.float32), (0, odim_p - odim)).reshape(1, odim_p)
    b2k = jnp.pad(b2.astype(jnp.float32), (0, odim_p - odim)).reshape(1, odim_p)

    kernel = _make_kernel(tile_t2, idim, odim, odim_p, cdt)

    rows_xw = 2 * tile_t2 + 8
    rows_xe = _round_up(tile_t2 + 2, 8)
    rows_xo = _round_up(tile_t2 + 1, 8)
    rows_ys = _round_up(tile_t2 + 1, 8)

    flops = 2 * B * (T1 * 3 * idim * odim + T2 * 3 * odim * odim)
    transcendentals = B * (T1 + T2) * odim
    bytes_accessed = (B * T * idim * elt + B * T2 * odim * elt
                      + (w1.size + w2.size) * elt + (b1.size + b2.size) * 4)

    out = pl.pallas_call(
        kernel,
        out_shape=jax.ShapeDtypeStruct((B, T2, odim), x.dtype),
        grid_spec=pltpu.PrefetchScalarGridSpec(
            num_scalar_prefetch=0,
            grid=(B, nt),
            in_specs=[
                # main window block: x rows [2*t*tile_t2, 2*(t+1)*tile_t2)
                pl.BlockSpec((1, 2 * tile_t2, idim), lambda b, t: (b, t, 0)),
                # halo block (next 3 rows); index clamped for the last tile so
                # it never starts out of bounds (its data then only feeds
                # output rows >= T2, which are masked on writeback).
                pl.BlockSpec(
                    (1, _HALO, idim),
                    lambda b, t: (b, jnp.minimum((t + 1) * halo_blk, h_max), 0)),
                pl.BlockSpec((3 * idim, odim_p), lambda b, t: (0, 0)),
                pl.BlockSpec((1, odim_p), lambda b, t: (0, 0)),
                pl.BlockSpec((3 * odim_p, odim_p), lambda b, t: (0, 0)),
                pl.BlockSpec((1, odim_p), lambda b, t: (0, 0)),
            ],
            out_specs=pl.BlockSpec((1, tile_t2, odim), lambda b, t: (b, t, 0)),
            scratch_shapes=[
                pltpu.VMEM((rows_xw, idim), jnp.float32),   # staged window
                pltpu.VMEM((rows_xe, idim), cdt),           # even window rows
                pltpu.VMEM((rows_xo, idim), cdt),           # odd window rows
                pltpu.VMEM((rows_ys, 2 * odim_p), cdt),     # [ye | yo]
            ],
        ),
        compiler_params=pltpu.CompilerParams(
            # TODO(synk): pltpu.CORE_PARALLEL on the time axis for v7x 2-TC.
            dimension_semantics=("parallel", "parallel"),
            vmem_limit_bytes=int((cap * 3) // 4)),
        cost_estimate=pl.CostEstimate(
            flops=int(flops),
            transcendentals=int(transcendentals),
            bytes_accessed=int(bytes_accessed)),
    )(x, x, w1k, b1k, w2k, b2k)

    return out


def _reference(x, w1, b1, w2, b2):
    """Pure-JAX (f32) reference mirroring the PyTorch module exactly."""
    xt = jnp.transpose(x, (0, 2, 1))                              # (B, idim, T)
    y = jax.lax.conv_general_dilated(
        xt, w1, window_strides=(1,), padding="VALID",
        dimension_numbers=("NCH", "OIH", "NCH"))
    y = jax.nn.gelu(y + b1[None, :, None], approximate=False)
    y = jax.lax.conv_general_dilated(
        y, w2, window_strides=(2,), padding="VALID",
        dimension_numbers=("NCH", "OIH", "NCH"))
    y = jax.nn.gelu(y + b2[None, :, None], approximate=False)
    return jnp.transpose(y, (0, 2, 1))                            # (B, T2, odim)


if __name__ == "__main__":
    B, T, idim, odim = 2, 16, 32, 32
    key = jax.random.PRNGKey(0)
    k1, k2, k3, k4, k5 = jax.random.split(key, 5)

    x = jax.random.normal(k1, (B, T, idim), jnp.float32)
    w1 = jax.random.normal(k2, (odim, idim, 3), jnp.float32) * 0.1
    b1 = jax.random.normal(k3, (odim,), jnp.float32) * 0.1
    w2 = jax.random.normal(k4, (odim, odim, 3), jnp.float32) * 0.1
    b2 = jax.random.normal(k5, (odim,), jnp.float32) * 0.1

    # bf16 activations/weights exercise the MXU fast path; the reference is
    # run in f32 on the same bf16-rounded values so the comparison isolates
    # kernel error (bf16 rounding inside the kernel + erf approx).
    x_bf = x.astype(jnp.bfloat16)
    w1_bf = w1.astype(jnp.bfloat16)
    w2_bf = w2.astype(jnp.bfloat16)

    out = gxl_conv1d_subsampling2(x_bf, w1_bf, b1, w2_bf, b2)
    out = jax.block_until_ready(out)

    ref = _reference(x_bf.astype(jnp.float32), w1_bf.astype(jnp.float32), b1,
                     w2_bf.astype(jnp.float32), b2)
    np.testing.assert_allclose(np.asarray(out, dtype=np.float32),
                               np.asarray(ref, dtype=np.float32),
                               rtol=2e-2, atol=2e-2)
    print("KERNEL_OK")
</pallas_src>

<mosaic_0001>
module attributes {stable_mosaic.version = 11 : i64} {
  func.func @kernel(%arg0: i32, %arg1: i32, %arg2: memref<1x16x32xbf16, #tpu.memory_space<vmem>>, %arg3: memref<1x16x32xbf16, #tpu.memory_space<vmem>>, %arg4: memref<96x128xbf16, #tpu.memory_space<vmem>>, %arg5: memref<1x128xf32, #tpu.memory_space<vmem>>, %arg6: memref<384x128xbf16, #tpu.memory_space<vmem>>, %arg7: memref<1x128xf32, #tpu.memory_space<vmem>>, %arg8: memref<1x8x32xbf16, #tpu.memory_space<vmem>>, %arg9: memref<24x32xf32, #tpu.memory_space<vmem>>, %arg10: memref<16x32xbf16, #tpu.memory_space<vmem>>, %arg11: memref<16x32xbf16, #tpu.memory_space<vmem>>, %arg12: memref<16x256xbf16, #tpu.memory_space<vmem>>) attributes {dimension_semantics = [#tpu.dimension_semantics<parallel>, #tpu.dimension_semantics<parallel>], iteration_bounds = array<i64: 2, 1>, scalar_prefetch = 0 : i64, scratch_operands = 4 : i64, tpu.core_type = #tpu.core_type<tc>, window_params = [{transform_indices = @transform_0, window_bounds = array<i64: 1, 16, 32>}, {transform_indices = @transform_1, window_bounds = array<i64: 1, 16, 32>}, {pipeline_mode = #tpu.pipeline_mode<synchronous>, transform_indices = @transform_2, window_bounds = array<i64: 96, 128>}, {pipeline_mode = #tpu.pipeline_mode<synchronous>, transform_indices = @transform_3, window_bounds = array<i64: 1, 128>}, {pipeline_mode = #tpu.pipeline_mode<synchronous>, transform_indices = @transform_4, window_bounds = array<i64: 384, 128>}, {pipeline_mode = #tpu.pipeline_mode<synchronous>, transform_indices = @transform_5, window_bounds = array<i64: 1, 128>}, {transform_indices = @transform_6, window_bounds = array<i64: 1, 8, 32>}]} {
    %c0 = arith.constant 0 : index
    %c0_0 = arith.constant 0 : index
    %c0_1 = arith.constant 0 : index
    %0 = vector.load %arg2[%c0, %c0_0, %c0_1] : memref<1x16x32xbf16, #tpu.memory_space<vmem>>, vector<1x16x32xbf16>
    %1 = vector.shape_cast %0 : vector<1x16x32xbf16> to vector<16x32xbf16>
    %2 = arith.extf %1 : vector<16x32xbf16> to vector<16x32xf32>
    %c0_2 = arith.constant 0 : index
    %c0_3 = arith.constant 0 : index
    %3 = vector.load %arg9[%c0_2, %c0_3] : memref<24x32xf32, #tpu.memory_space<vmem>>, vector<16x32xf32>
    tpu.vector_store %arg9[%c0_2, %c0_3], %2 {strides = array<i32>} : memref<24x32xf32, #tpu.memory_space<vmem>>, vector<16x32xf32>,
    %c0_4 = arith.constant 0 : index
    %c0_5 = arith.constant 0 : index
    %c0_6 = arith.constant 0 : index
    %4 = vector.load %arg3[%c0_4, %c0_5, %c0_6] : memref<1x16x32xbf16, #tpu.memory_space<vmem>>, vector<1x16x32xbf16>
    %5 = vector.shape_cast %4 : vector<1x16x32xbf16> to vector<16x32xbf16>
    %6 = vector.extract_strided_slice %5 {offsets = [0, 0], sizes = [3, 32], strides = [1, 1]} : vector<16x32xbf16> to vector<3x32xbf16>
    %7 = arith.extf %6 : vector<3x32xbf16> to vector<3x32xf32>
    %c16 = arith.constant 16 : index
    %c0_7 = arith.constant 0 : index
    %8 = vector.load %arg9[%c16, %c0_7] : memref<24x32xf32, #tpu.memory_space<vmem>>, vector<3x32xf32>
    tpu.vector_store %arg9[%c16, %c0_7], %7 {strides = array<i32>} : memref<24x32xf32, #tpu.memory_space<vmem>>, vector<3x32xf32>,
    %c0_8 = arith.constant 0 : index
    %c0_9 = arith.constant 0 : index
    %9 = tpu.strided_load %arg9[%c0_8, %c0_9] {strides = array<i32: 2, 1>} : memref<24x32xf32, #tpu.memory_space<vmem>>, vector<10x32xf32>
    %10 = arith.truncf %9 : vector<10x32xf32> to vector<10x32xbf16>
    %c0_10 = arith.constant 0 : index
    %c0_11 = arith.constant 0 : index
    %11 = vector.load %arg10[%c0_10, %c0_11] : memref<16x32xbf16, #tpu.memory_space<vmem>>, vector<10x32xbf16>
    tpu.vector_store %arg10[%c0_10, %c0_11], %10 {strides = array<i32>} : memref<16x32xbf16, #tpu.memory_space<vmem>>, vector<10x32xbf16>,
    %c1 = arith.constant 1 : index
    %c0_12 = arith.constant 0 : index
    %12 = tpu.strided_load %arg9[%c1, %c0_12] {strides = array<i32: 2, 1>} : memref<24x32xf32, #tpu.memory_space<vmem>>, vector<9x32xf32>
    %13 = arith.truncf %12 : vector<9x32xf32> to vector<9x32xbf16>
    %c0_13 = arith.constant 0 : index
    %c0_14 = arith.constant 0 : index
    %14 = vector.load %arg11[%c0_13, %c0_14] : memref<16x32xbf16, #tpu.memory_space<vmem>>, vector<9x32xbf16>
    tpu.vector_store %arg11[%c0_13, %c0_14], %13 {strides = array<i32>} : memref<16x32xbf16, #tpu.memory_space<vmem>>, vector<9x32xbf16>,
    %c0_15 = arith.constant 0 : index
    %c0_16 = arith.constant 0 : index
    %15 = vector.load %arg4[%c0_15, %c0_16] : memref<96x128xbf16, #tpu.memory_space<vmem>>, vector<32x128xbf16>
    %c32 = arith.constant 32 : index
    %c0_17 = arith.constant 0 : index
    %16 = vector.load %arg4[%c32, %c0_17] : memref<96x128xbf16, #tpu.memory_space<vmem>>, vector<32x128xbf16>
    %c64 = arith.constant 64 : index
    %c0_18 = arith.constant 0 : index
    %17 = vector.load %arg4[%c64, %c0_18] : memref<96x128xbf16, #tpu.memory_space<vmem>>, vector<32x128xbf16>
    %c0_19 = arith.constant 0 : index
    %c0_20 = arith.constant 0 : index
    %18 = vector.load %arg10[%c0_19, %c0_20] : memref<16x32xbf16, #tpu.memory_space<vmem>>, vector<9x32xbf16>
    %cst = arith.constant dense<0.000000e+00> : vector<9x128xf32>
    %19 = tpu.matmul %18, %15, %cst {dimension_numbers = #tpu.dot_dimension_numbers<[1], [0], [0], [1], [0, 0, 1, 1], [], []>} : vector<9x32xbf16>, vector<32x128xbf16>, vector<9x128xf32> -> vector<9x128xf32>
    %c0_21 = arith.constant 0 : index
    %c0_22 = arith.constant 0 : index
    %20 = vector.load %arg11[%c0_21, %c0_22] : memref<16x32xbf16, #tpu.memory_space<vmem>>, vector<9x32xbf16>
    %cst_23 = arith.constant dense<0.000000e+00> : vector<9x128xf32>
    %21 = tpu.matmul %20, %16, %cst_23 {dimension_numbers = #tpu.dot_dimension_numbers<[1], [0], [0], [1], [0, 0, 1, 1], [], []>} : vector<9x32xbf16>, vector<32x128xbf16>, vector<9x128xf32> -> vector<9x128xf32>
    %22 = arith.addf %19, %21 : vector<9x128xf32>
    %c1_24 = arith.constant 1 : index
    %c0_25 = arith.constant 0 : index
    %23 = vector.load %arg10[%c1_24, %c0_25] : memref<16x32xbf16, #tpu.memory_space<vmem>>, vector<9x32xbf16>
    %cst_26 = arith.constant dense<0.000000e+00> : vector<9x128xf32>
    %24 = tpu.matmul %23, %17, %cst_26 {dimension_numbers = #tpu.dot_dimension_numbers<[1], [0], [0], [1], [0, 0, 1, 1], [], []>} : vector<9x32xbf16>, vector<32x128xbf16>, vector<9x128xf32> -> vector<9x128xf32>
    %25 = arith.addf %22, %24 : vector<9x128xf32>
    %c0_27 = arith.constant 0 : index
    %c0_28 = arith.constant 0 : index
    %26 = vector.load %arg5[%c0_27, %c0_28] : memref<1x128xf32, #tpu.memory_space<vmem>>, vector<1x128xf32>
    %27 = vector.broadcast %26 : vector<1x128xf32> to vector<9x128xf32>
    %28 = arith.addf %25, %27 : vector<9x128xf32>
    %29 = math.absf %28 : vector<9x128xf32>
    %cst_29 = arith.constant 0.707106769 : f32
    %30 = vector.broadcast %cst_29 : f32 to vector<9x128xf32>
    %31 = arith.mulf %29, %30 : vector<9x128xf32>
    %cst_30 = arith.constant 0.327591091 : f32
    %32 = vector.broadcast %cst_30 : f32 to vector<9x128xf32>
    %33 = arith.mulf %32, %31 : vector<9x128xf32>
    %cst_31 = arith.constant 1.000000e+00 : f32
    %34 = vector.broadcast %cst_31 : f32 to vector<9x128xf32>
    %35 = arith.addf %34, %33 : vector<9x128xf32>
    %36 = tpu.reciprocal %35 {approx = true} : vector<9x128xf32> -> vector<9x128xf32>
    %cst_32 = arith.constant 1.06140542 : f32
    %37 = vector.broadcast %cst_32 : f32 to vector<9x128xf32>
    %38 = arith.mulf %37, %36 : vector<9x128xf32>
    %cst_33 = arith.constant 1.45315206 : f32
    %39 = vector.broadcast %cst_33 : f32 to vector<9x128xf32>
    %40 = arith.subf %38, %39 : vector<9x128xf32>
    %41 = arith.mulf %40, %36 : vector<9x128xf32>
    %cst_34 = arith.constant 1.42141378 : f32
    %42 = vector.broadcast %cst_34 : f32 to vector<9x128xf32>
    %43 = arith.addf %41, %42 : vector<9x128xf32>
    %44 = arith.mulf %43, %36 : vector<9x128xf32>
    %cst_35 = arith.constant 0.284496725 : f32
    %45 = vector.broadcast %cst_35 : f32 to vector<9x128xf32>
    %46 = arith.subf %44, %45 : vector<9x128xf32>
    %47 = arith.mulf %46, %36 : vector<9x128xf32>
    %cst_36 = arith.constant 0.254829586 : f32
    %48 = vector.broadcast %cst_36 : f32 to vector<9x128xf32>
    %49 = arith.addf %47, %48 : vector<9x128xf32>
    %50 = arith.mulf %49, %36 : vector<9x128xf32>
    %cst_37 = arith.constant 0.000000e+00 : f32
    %51 = vector.broadcast %cst_37 : f32 to vector<9x128xf32>
    %52 = arith.subf %51, %31 : vector<9x128xf32>
    %53 = arith.mulf %52, %31 : vector<9x128xf32>
    %54 = math.exp %53 : vector<9x128xf32>
    %55 = arith.mulf %50, %54 : vector<9x128xf32>
    %cst_38 = arith.constant 1.000000e+00 : f32
    %56 = vector.broadcast %cst_38 : f32 to vector<9x128xf32>
    %57 = arith.subf %56, %55 : vector<9x128xf32>
    %cst_39 = arith.constant 0.000000e+00 : f32
    %58 = vector.broadcast %cst_39 : f32 to vector<9x128xf32>
    %59 = arith.cmpf olt, %28, %58 : vector<9x128xf32>
    %cst_40 = arith.constant 0.000000e+00 : f32
    %60 = vector.broadcast %cst_40 : f32 to vector<9x128xf32>
    %61 = arith.subf %60, %57 : vector<9x128xf32>
    %62 = arith.select %59, %61, %57 : vector<9x128xi1>, vector<9x128xf32>
    %cst_41 = arith.constant 5.000000e-01 : f32
    %63 = vector.broadcast %cst_41 : f32 to vector<9x128xf32>
    %64 = arith.mulf %63, %28 : vector<9x128xf32>
    %cst_42 = arith.constant 1.000000e+00 : f32
    %65 = vector.broadcast %cst_42 : f32 to vector<9x128xf32>
    %66 = arith.addf %65, %62 : vector<9x128xf32>
    %67 = arith.mulf %64, %66 : vector<9x128xf32>
    %68 = arith.truncf %67 : vector<9x128xf32> to vector<9x128xbf16>
    %c0_43 = arith.constant 0 : index
    %c0_44 = arith.constant 0 : index
    %69 = vector.load %arg12[%c0_43, %c0_44] : memref<16x256xbf16, #tpu.memory_space<vmem>>, vector<9x128xbf16>
    tpu.vector_store %arg12[%c0_43, %c0_44], %68 {strides = array<i32>} : memref<16x256xbf16, #tpu.memory_space<vmem>>, vector<9x128xbf16>,
    %c0_45 = arith.constant 0 : index
    %c0_46 = arith.constant 0 : index
    %70 = vector.load %arg11[%c0_45, %c0_46] : memref<16x32xbf16, #tpu.memory_space<vmem>>, vector<8x32xbf16>
    %cst_47 = arith.constant dense<0.000000e+00> : vector<8x128xf32>
    %71 = tpu.matmul %70, %15, %cst_47 {dimension_numbers = #tpu.dot_dimension_numbers<[1], [0], [0], [1], [0, 0, 1, 1], [], []>} : vector<8x32xbf16>, vector<32x128xbf16>, vector<8x128xf32> -> vector<8x128xf32>
    %c1_48 = arith.constant 1 : index
    %c0_49 = arith.constant 0 : index
    %72 = vector.load %arg10[%c1_48, %c0_49] : memref<16x32xbf16, #tpu.memory_space<vmem>>, vector<8x32xbf16>
    %cst_50 = arith.constant dense<0.000000e+00> : vector<8x128xf32>
    %73 = tpu.matmul %72, %16, %cst_50 {dimension_numbers = #tpu.dot_dimension_numbers<[1], [0], [0], [1], [0, 0, 1, 1], [], []>} : vector<8x32xbf16>, vector<32x128xbf16>, vector<8x128xf32> -> vector<8x128xf32>
    %74 = arith.addf %71, %73 : vector<8x128xf32>
    %c1_51 = arith.constant 1 : index
    %c0_52 = arith.constant 0 : index
    %75 = vector.load %arg11[%c1_51, %c0_52] : memref<16x32xbf16, #tpu.memory_space<vmem>>, vector<8x32xbf16>
    %cst_53 = arith.constant dense<0.000000e+00> : vector<8x128xf32>
    %76 = tpu.matmul %75, %17, %cst_53 {dimension_numbers = #tpu.dot_dimension_numbers<[1], [0], [0], [1], [0, 0, 1, 1], [], []>} : vector<8x32xbf16>, vector<32x128xbf16>, vector<8x128xf32> -> vector<8x128xf32>
    %77 = arith.addf %74, %76 : vector<8x128xf32>
    %c0_54 = arith.constant 0 : index
    %c0_55 = arith.constant 0 : index
    %78 = vector.load %arg5[%c0_54, %c0_55] : memref<1x128xf32, #tpu.memory_space<vmem>>, vector<1x128xf32>
    %79 = vector.broadcast %78 : vector<1x128xf32> to vector<8x128xf32>
    %80 = arith.addf %77, %79 : vector<8x128xf32>
    %81 = math.absf %80 : vector<8x128xf32>
    %cst_56 = arith.constant 0.707106769 : f32
    %82 = vector.broadcast %cst_56 : f32 to vector<8x128xf32>
    %83 = arith.mulf %81, %82 : vector<8x128xf32>
    %cst_57 = arith.constant 0.327591091 : f32
    %84 = vector.broadcast %cst_57 : f32 to vector<8x128xf32>
    %85 = arith.mulf %84, %83 : vector<8x128xf32>
    %cst_58 = arith.constant 1.000000e+00 : f32
    %86 = vector.broadcast %cst_58 : f32 to vector<8x128xf32>
    %87 = arith.addf %86, %85 : vector<8x128xf32>
    %88 = tpu.reciprocal %87 {approx = true} : vector<8x128xf32> -> vector<8x128xf32>
    %cst_59 = arith.constant 1.06140542 : f32
    %89 = vector.broadcast %cst_59 : f32 to vector<8x128xf32>
    %90 = arith.mulf %89, %88 : vector<8x128xf32>
    %cst_60 = arith.constant 1.45315206 : f32
    %91 = vector.broadcast %cst_60 : f32 to vector<8x128xf32>
    %92 = arith.subf %90, %91 : vector<8x128xf32>
    %93 = arith.mulf %92, %88 : vector<8x128xf32>
    %cst_61 = arith.constant 1.42141378 : f32
    %94 = vector.broadcast %cst_61 : f32 to vector<8x128xf32>
    %95 = arith.addf %93, %94 : vector<8x128xf32>
    %96 = arith.mulf %95, %88 : vector<8x128xf32>
    %cst_62 = arith.constant 0.284496725 : f32
    %97 = vector.broadcast %cst_62 : f32 to vector<8x128xf32>
    %98 = arith.subf %96, %97 : vector<8x128xf32>
    %99 = arith.mulf %98, %88 : vector<8x128xf32>
    %cst_63 = arith.constant 0.254829586 : f32
    %100 = vector.broadcast %cst_63 : f32 to vector<8x128xf32>
    %101 = arith.addf %99, %100 : vector<8x128xf32>
    %102 = arith.mulf %101, %88 : vector<8x128xf32>
    %cst_64 = arith.constant 0.000000e+00 : f32
    %103 = vector.broadcast %cst_64 : f32 to vector<8x128xf32>
    %104 = arith.subf %103, %83 : vector<8x128xf32>
    %105 = arith.mulf %104, %83 : vector<8x128xf32>
    %106 = math.exp %105 : vector<8x128xf32>
    %107 = arith.mulf %102, %106 : vector<8x128xf32>
    %cst_65 = arith.constant 1.000000e+00 : f32
    %108 = vector.broadcast %cst_65 : f32 to vector<8x128xf32>
    %109 = arith.subf %108, %107 : vector<8x128xf32>
    %cst_66 = arith.constant 0.000000e+00 : f32
    %110 = vector.broadcast %cst_66 : f32 to vector<8x128xf32>
    %111 = arith.cmpf olt, %80, %110 : vector<8x128xf32>
    %cst_67 = arith.constant 0.000000e+00 : f32
    %112 = vector.broadcast %cst_67 : f32 to vector<8x128xf32>
    %113 = arith.subf %112, %109 : vector<8x128xf32>
    %114 = arith.select %111, %113, %109 : vector<8x128xi1>, vector<8x128xf32>
    %cst_68 = arith.constant 5.000000e-01 : f32
    %115 = vector.broadcast %cst_68 : f32 to vector<8x128xf32>
    %116 = arith.mulf %115, %80 : vector<8x128xf32>
    %cst_69 = arith.constant 1.000000e+00 : f32
    %117 = vector.broadcast %cst_69 : f32 to vector<8x128xf32>
    %118 = arith.addf %117, %114 : vector<8x128xf32>
    %119 = arith.mulf %116, %118 : vector<8x128xf32>
    %120 = arith.truncf %119 : vector<8x128xf32> to vector<8x128xbf16>
    %c0_70 = arith.constant 0 : index
    %c128 = arith.constant 128 : index
    %121 = vector.load %arg12[%c0_70, %c128] : memref<16x256xbf16, #tpu.memory_space<vmem>>, vector<8x128xbf16>
    tpu.vector_store %arg12[%c0_70, %c128], %120 {strides = array<i32>} : memref<16x256xbf16, #tpu.memory_space<vmem>>, vector<8x128xbf16>,
    %c0_71 = arith.constant 0 : index
    %c0_72 = arith.constant 0 : index
    %122 = vector.load %arg12[%c0_71, %c0_72] : memref<16x256xbf16, #tpu.memory_space<vmem>>, vector<8x256xbf16>
    %c0_73 = arith.constant 0 : index
    %c0_74 = arith.constant 0 : index
    %123 = vector.load %arg6[%c0_73, %c0_74] : memref<384x128xbf16, #tpu.memory_space<vmem>>, vector<256x128xbf16>
    %cst_75 = arith.constant dense<0.000000e+00> : vector<8x128xf32>
    %124 = tpu.matmul %122, %123, %cst_75 {dimension_numbers = #tpu.dot_dimension_numbers<[1], [0], [0], [1], [0, 0, 1, 1], [], []>} : vector<8x256xbf16>, vector<256x128xbf16>, vector<8x128xf32> -> vector<8x128xf32>
    %c1_76 = arith.constant 1 : index
    %c0_77 = arith.constant 0 : index
    %125 = vector.load %arg12[%c1_76, %c0_77] : memref<16x256xbf16, #tpu.memory_space<vmem>>, vector<8x128xbf16>
    %c256 = arith.constant 256 : index
    %c0_78 = arith.constant 0 : index
    %126 = vector.load %arg6[%c256, %c0_78] : memref<384x128xbf16, #tpu.memory_space<vmem>>, vector<128x128xbf16>
    %cst_79 = arith.constant dense<0.000000e+00> : vector<8x128xf32>
    %127 = tpu.matmul %125, %126, %cst_79 {dimension_numbers = #tpu.dot_dimension_numbers<[1], [0], [0], [1], [0, 0, 1, 1], [], []>} : vector<8x128xbf16>, vector<128x128xbf16>, vector<8x128xf32> -> vector<8x128xf32>
    %128 = arith.addf %124, %127 : vector<8x128xf32>
    %c0_80 = arith.constant 0 : index
    %c0_81 = arith.constant 0 : index
    %129 = vector.load %arg7[%c0_80, %c0_81] : memref<1x128xf32, #tpu.memory_space<vmem>>, vector<1x128xf32>
    %130 = vector.broadcast %129 : vector<1x128xf32> to vector<8x128xf32>
    %131 = arith.addf %128, %130 : vector<8x128xf32>
    %132 = math.absf %131 : vector<8x128xf32>
    %cst_82 = arith.constant 0.707106769 : f32
    %133 = vector.broadcast %cst_82 : f32 to vector<8x128xf32>
    %134 = arith.mulf %132, %133 : vector<8x128xf32>
    %cst_83 = arith.constant 0.327591091 : f32
    %135 = vector.broadcast %cst_83 : f32 to vector<8x128xf32>
    %136 = arith.mulf %135, %134 : vector<8x128xf32>
    %cst_84 = arith.constant 1.000000e+00 : f32
    %137 = vector.broadcast %cst_84 : f32 to vector<8x128xf32>
    %138 = arith.addf %137, %136 : vector<8x128xf32>
    %139 = tpu.reciprocal %138 {approx = true} : vector<8x128xf32> -> vector<8x128xf32>
    %cst_85 = arith.constant 1.06140542 : f32
    %140 = vector.broadcast %cst_85 : f32 to vector<8x128xf32>
    %141 = arith.mulf %140, %139 : vector<8x128xf32>
    %cst_86 = arith.constant 1.45315206 : f32
    %142 = vector.broadcast %cst_86 : f32 to vector<8x128xf32>
    %143 = arith.subf %141, %142 : vector<8x128xf32>
    %144 = arith.mulf %143, %139 : vector<8x128xf32>
    %cst_87 = arith.constant 1.42141378 : f32
    %145 = vector.broadcast %cst_87 : f32 to vector<8x128xf32>
    %146 = arith.addf %144, %145 : vector<8x128xf32>
    %147 = arith.mulf %146, %139 : vector<8x128xf32>
    %cst_88 = arith.constant 0.284496725 : f32
    %148 = vector.broadcast %cst_88 : f32 to vector<8x128xf32>
    %149 = arith.subf %147, %148 : vector<8x128xf32>
    %150 = arith.mulf %149, %139 : vector<8x128xf32>
    %cst_89 = arith.constant 0.254829586 : f32
    %151 = vector.broadcast %cst_89 : f32 to vector<8x128xf32>
    %152 = arith.addf %150, %151 : vector<8x128xf32>
    %153 = arith.mulf %152, %139 : vector<8x128xf32>
    %cst_90 = arith.constant 0.000000e+00 : f32
    %154 = vector.broadcast %cst_90 : f32 to vector<8x128xf32>
    %155 = arith.subf %154, %134 : vector<8x128xf32>
    %156 = arith.mulf %155, %134 : vector<8x128xf32>
    %157 = math.exp %156 : vector<8x128xf32>
    %158 = arith.mulf %153, %157 : vector<8x128xf32>
    %cst_91 = arith.constant 1.000000e+00 : f32
    %159 = vector.broadcast %cst_91 : f32 to vector<8x128xf32>
    %160 = arith.subf %159, %158 : vector<8x128xf32>
    %cst_92 = arith.constant 0.000000e+00 : f32
    %161 = vector.broadcast %cst_92 : f32 to vector<8x128xf32>
    %162 = arith.cmpf olt, %131, %161 : vector<8x128xf32>
    %cst_93 = arith.constant 0.000000e+00 : f32
    %163 = vector.broadcast %cst_93 : f32 to vector<8x128xf32>
    %164 = arith.subf %163, %160 : vector<8x128xf32>
    %165 = arith.select %162, %164, %160 : vector<8x128xi1>, vector<8x128xf32>
    %cst_94 = arith.constant 5.000000e-01 : f32
    %166 = vector.broadcast %cst_94 : f32 to vector<8x128xf32>
    %167 = arith.mulf %166, %131 : vector<8x128xf32>
    %cst_95 = arith.constant 1.000000e+00 : f32
    %168 = vector.broadcast %cst_95 : f32 to vector<8x128xf32>
    %169 = arith.addf %168, %165 : vector<8x128xf32>
    %170 = arith.mulf %167, %169 : vector<8x128xf32>
    %171 = vector.extract_strided_slice %170 {offsets = [0, 0], sizes = [8, 32], strides = [1, 1]} : vector<8x128xf32> to vector<8x32xf32>
    %172 = arith.truncf %171 : vector<8x32xf32> to vector<8x32xbf16>
    %c0_96 = arith.constant 0 : index
    %c0_97 = arith.constant 0 : index
    %c0_98 = arith.constant 0 : index
    %173 = vector.load %arg8[%c0_96, %c0_97, %c0_98] : memref<1x8x32xbf16, #tpu.memory_space<vmem>>, vector<1x8x32xbf16>
    %174 = vector.shape_cast %173 : vector<1x8x32xbf16> to vector<8x32xbf16>
    %175 = vector.shape_cast %172 : vector<8x32xbf16> to vector<1x8x32xbf16>
    tpu.vector_store %arg8[%c0_96, %c0_97, %c0_98], %175 {strides = array<i32>} : memref<1x8x32xbf16, #tpu.memory_space<vmem>>, vector<1x8x32xbf16>,
    return
  }
  func.func @transform_0(%arg0: i32, %arg1: i32) -> (i32, i32, i32) {
    %c0_i32 = arith.constant 0 : i32
    %c0_i32_0 = arith.constant 0 : i32
    return %arg0, %arg1, %c0_i32 : i32, i32, i32
  }
  func.func @transform_1(%arg0: i32, %arg1: i32) -> (i32, i32, i32) {
    %c1_i32 = arith.constant 1 : i32
    %0 = arith.addi %arg1, %c1_i32 : i32
    %c1_i32_0 = arith.constant 1 : i32
    %1 = arith.muli %0, %c1_i32_0 : i32
    %c0_i32 = arith.constant 0 : i32
    %2 = arith.minsi %1, %c0_i32 : i32
    %c0_i32_1 = arith.constant 0 : i32
    %c0_i32_2 = arith.constant 0 : i32
    return %arg0, %2, %c0_i32_1 : i32, i32, i32
  }
  func.func @transform_2(%arg0: i32, %arg1: i32) -> (i32, i32) {
    %c0_i32 = arith.constant 0 : i32
    %c0_i32_0 = arith.constant 0 : i32
    %c0_i32_1 = arith.constant 0 : i32
    return %c0_i32, %c0_i32_0 : i32, i32
  }
  func.func @transform_3(%arg0: i32, %arg1: i32) -> (i32, i32) {
    %c0_i32 = arith.constant 0 : i32
    %c0_i32_0 = arith.constant 0 : i32
    %c0_i32_1 = arith.constant 0 : i32
    return %c0_i32, %c0_i32_0 : i32, i32
  }
  func.func @transform_4(%arg0: i32, %arg1: i32) -> (i32, i32) {
    %c0_i32 = arith.constant 0 : i32
    %c0_i32_0 = arith.constant 0 : i32
    %c0_i32_1 = arith.constant 0 : i32
    return %c0_i32, %c0_i32_0 : i32, i32
  }
  func.func @transform_5(%arg0: i32, %arg1: i32) -> (i32, i32) {
    %c0_i32 = arith.constant 0 : i32
    %c0_i32_0 = arith.constant 0 : i32
    %c0_i32_1 = arith.constant 0 : i32
    return %c0_i32, %c0_i32_0 : i32, i32
  }
  func.func @transform_6(%arg0: i32, %arg1: i32) -> (i32, i32, i32) {
    %c0_i32 = arith.constant 0 : i32
    %c0_i32_0 = arith.constant 0 : i32
    return %arg0, %arg1, %c0_i32 : i32, i32, i32
  }
}

</mosaic_0001>

<llo_original>
// kernel: gxl_conv1d_subsampling2.1
$region0: #{gxl_conv1d_subsampling2.1}
  #allocation0 [shape = 'u32[]', space=smem, size = 0x4, offset = 0x4, fixed_abs, tag = 'smem constant byte address 0x4 - core index']
  #allocation1 [shape = 'u32[144,128]{1,0:T(1,128)}', space=vmem, size = 0x12000, scoped, tag = 'internal scratch']
  #allocation2 [shape = 'f32[24,32]{1,0:T(8,128)}', space=vmem, size = 0x3000, scoped, tag = 'scratch operand']
  #allocation3 [shape = 'bf16[16,32]{1,0:T(16,128)(2,1)}', space=vmem, size = 0x1000, scoped, tag = 'scratch operand']
  #allocation4 [shape = 'bf16[16,32]{1,0:T(16,128)(2,1)}', space=vmem, size = 0x1000, scoped, tag = 'scratch operand']
  #allocation5 [shape = 'bf16[16,256]{1,0:T(16,128)(2,1)}', space=vmem, size = 0x2000, scoped, tag = 'scratch operand']
  %s0 = inlined_call_operand.vmem [shape: bf16[2,16,32], index: 0, kind: input, shape index: {}, may-alias: {0,1}]
  %s1 = inlined_call_operand.vmem [shape: bf16[2,16,32], index: 1, kind: input, shape index: {}, may-alias: {0,1}]
  %s2 = inlined_call_operand.vmem [shape: bf16[96,128], index: 2, kind: input, shape index: {}]
  %s3 = inlined_call_operand.vmem [shape: f32[1,128], index: 3, kind: input, shape index: {}]
  %s4 = inlined_call_operand.vmem [shape: bf16[384,128], index: 4, kind: input, shape index: {}]
  %s5 = inlined_call_operand.vmem [shape: f32[1,128], index: 5, kind: input, shape index: {}]
  %s6 = inlined_call_operand.vmem [shape: bf16[2,6,32], index: 6, kind: output, shape index: {}]
  %s7 = sld [smem:[#allocation0]]
  $region57: #{gxl_conv1d_subsampling2.1} parent=0
    _
  %s9 = ssub.s32 1, %s7
  %s10 = scalar_select 0, %s9, %s7
  loop: start=0, step=1, limit=4
  $region2: #{gxl_conv1d_subsampling2.1} parent=0 // loop_pre_header
    _
  $region3: #{gxl_conv1d_subsampling2.1} parent=0 // loop_header
    %s12 = sphi 0, %s16
    %p13 = scmp.ge.s32.totalorder %s12, 4
    %s19 = sphi 0, %s31
    %s20 = sphi 0, %s27
    %s21 = sphi 0, %s19
    %s22 = sphi 0, %s20
    %s23 = sphi 0, %s21
    %s24 = sphi 0, %s22
    %s36 = sphi 0, %s38
    %s39 = sphi 0, %s36
    %s40 = sphi 0, %s39
    %s56 = sphi 0, %s40
    %s70 = sphi 0, %s72
    %s73 = sphi 0, %s70
    %s74 = sphi 0, %s73
    %s90 = sphi 0, %s74
    %s94 = sphi 0, %s94
    %s96 = sphi 0, %s94
    %s97 = sphi 0, %s96
    %s111 = sphi 0, %s97
    %s115 = sphi 0, %s115
    %s117 = sphi 0, %s115
    %s118 = sphi 0, %s117
    %s132 = sphi 0, %s118
    %s136 = sphi 0, %s136
    %s138 = sphi 0, %s136
    %s139 = sphi 0, %s138
    %s153 = sphi 0, %s139
    %s157 = sphi 0, %s157
    %s159 = sphi 0, %s157
    %s160 = sphi 0, %s159
    %s174 = sphi 0, %s160
    %s182 = sphi 0, %s184
    %s185 = sphi 0, %s182
    %s186 = sphi 0, %s185
    %s202 = sphi 0, %s186
  $region4: #{gxl_conv1d_subsampling2.1} parent=0 // loop_header_branch
    %15 = sbr.rel (%p13) target = $region8
  $region5: #{gxl_conv1d_subsampling2.1} parent=0 // loop_body
    %s17 = ssub.s32 %s12, 1
    %s18 = ssub.s32 %s12, 2
    %s25 = sadd.s32 1, %s20
    %p26 = scmp.ge.s32.totalorder %s25, 1
    %s27 = scalar_select %p26, 0, %s25
    %s28 = sadd.s32 1, %s19
    %s29 = scalar_select %p26, %s28, %s19
    %p30 = scmp.ge.s32.totalorder %s29, 2
    %s31 = scalar_select %p30, 0, %s29
    %s32 = ssub.s32 %s19, %s31
    %s33 = ssub.s32 %s20, %s27
    %s34 = sor.u32 %s32, %s33
    %p35 = scmp.eq.s32.totalorder %s34, 0
    %s37 = sadd.s32 %s36, 1
    %s38 = scalar_select %p35, %s36, %s37
    %p41 = pneg %p35
    %p42 = scmp.eq.s32.totalorder %s12, 1
    %p43 = por %p41, %p42
    %p44 = scmp.ne.s32.totalorder %s36, %s39
    %p45 = scmp.eq.s32.totalorder %s12, 0
    %p46 = por %p44, %p45
    %p47 = scmp.ne.s32.totalorder %s36, %s39
    %p48 = scmp.eq.s32.totalorder %s17, 1
    %p49 = por %p47, %p48
    %p50 = scmp.ne.s32.totalorder %s39, %s40
    %p51 = scmp.eq.s32.totalorder %s17, 0
    %p52 = por %p50, %p51
    %p53 = scmp.ne.s32.totalorder %s39, %s40
    %p54 = scmp.eq.s32.totalorder %s18, 1
    %p55 = por %p53, %p54
    %p57 = scmp.ne.s32.totalorder %s40, %s56
    %p58 = scmp.eq.s32.totalorder %s18, 0
    %p59 = por %p57, %p58
    %s60 = sadd.s32 %s20, 1
    %p61 = scmp.lt.s32.totalorder %s60, 0
    %s62 = scalar_select %p61, %s60, 0
    %s63 = sadd.s32 %s27, 1
    %p64 = scmp.lt.s32.totalorder %s63, 0
    %s65 = scalar_select %p64, %s63, 0
    %s66 = ssub.s32 %s19, %s31
    %s67 = ssub.s32 %s62, %s65
    %s68 = sor.u32 %s66, %s67
    %p69 = scmp.eq.s32.totalorder %s68, 0
    %s71 = sadd.s32 %s70, 1
    %s72 = scalar_select %p69, %s70, %s71
    %p75 = pneg %p69
    %p76 = scmp.eq.s32.totalorder %s12, 1
    %p77 = por %p75, %p76
    %p78 = scmp.ne.s32.totalorder %s70, %s73
    %p79 = scmp.eq.s32.totalorder %s12, 0
    %p80 = por %p78, %p79
    %p81 = scmp.ne.s32.totalorder %s70, %s73
    %p82 = scmp.eq.s32.totalorder %s17, 1
    %p83 = por %p81, %p82
    %p84 = scmp.ne.s32.totalorder %s73, %s74
    %p85 = scmp.eq.s32.totalorder %s17, 0
    %p86 = por %p84, %p85
    %p87 = scmp.ne.s32.totalorder %s73, %s74
    %p88 = scmp.eq.s32.totalorder %s18, 1
    %p89 = por %p87, %p88
    %p91 = scmp.ne.s32.totalorder %s74, %s90
    %p92 = scmp.eq.s32.totalorder %s18, 0
    %p93 = por %p91, %p92
    %s95 = sadd.s32 %s94, 1
    %p98 = scmp.eq.s32.totalorder %s12, 1
    %p99 = scmp.ne.s32.totalorder %s94, %s96
    %p100 = scmp.eq.s32.totalorder %s12, 0
    %p101 = por %p99, %p100
    %p102 = scmp.ne.s32.totalorder %s94, %s96
    %p103 = scmp.eq.s32.totalorder %s17, 1
    %p104 = por %p102, %p103
    %p105 = scmp.ne.s32.totalorder %s96, %s97
    %p106 = scmp.eq.s32.totalorder %s17, 0
    %p107 = por %p105, %p106
    %p108 = scmp.ne.s32.totalorder %s96, %s97
    %p109 = scmp.eq.s32.totalorder %s18, 1
    %p110 = por %p108, %p109
    %p112 = scmp.ne.s32.totalorder %s97, %s111
    %p113 = scmp.eq.s32.totalorder %s18, 0
    %p114 = por %p112, %p113
    %s116 = sadd.s32 %s115, 1
    %p119 = scmp.eq.s32.totalorder %s12, 1
    %p120 = scmp.ne.s32.totalorder %s115, %s117
    %p121 = scmp.eq.s32.totalorder %s12, 0
    %p122 = por %p120, %p121
    %p123 = scmp.ne.s32.totalorder %s115, %s117
    %p124 = scmp.eq.s32.totalorder %s17, 1
    %p125 = por %p123, %p124
    %p126 = scmp.ne.s32.totalorder %s117, %s118
    %p127 = scmp.eq.s32.totalorder %s17, 0
    %p128 = por %p126, %p127
    %p129 = scmp.ne.s32.totalorder %s117, %s118
    %p130 = scmp.eq.s32.totalorder %s18, 1
    %p131 = por %p129, %p130
    %p133 = scmp.ne.s32.totalorder %s118, %s132
    %p134 = scmp.eq.s32.totalorder %s18, 0
    %p135 = por %p133, %p134
    %s137 = sadd.s32 %s136, 1
    %p140 = scmp.eq.s32.totalorder %s12, 1
    %p141 = scmp.ne.s32.totalorder %s136, %s138
    %p142 = scmp.eq.s32.totalorder %s12, 0
    %p143 = por %p141, %p142
    %p144 = scmp.ne.s32.totalorder %s136, %s138
    %p145 = scmp.eq.s32.totalorder %s17, 1
    %p146 = por %p144, %p145
    %p147 = scmp.ne.s32.totalorder %s138, %s139
    %p148 = scmp.eq.s32.totalorder %s17, 0
    %p149 = por %p147, %p148
    %p150 = scmp.ne.s32.totalorder %s138, %s139
    %p151 = scmp.eq.s32.totalorder %s18, 1
    %p152 = por %p150, %p151
    %p154 = scmp.ne.s32.totalorder %s139, %s153
    %p155 = scmp.eq.s32.totalorder %s18, 0
    %p156 = por %p154, %p155
    %s158 = sadd.s32 %s157, 1
    %p161 = scmp.eq.s32.totalorder %s12, 1
    %p162 = scmp.ne.s32.totalorder %s157, %s159
    %p163 = scmp.eq.s32.totalorder %s12, 0
    %p164 = por %p162, %p163
    %p165 = scmp.ne.s32.totalorder %s157, %s159
    %p166 = scmp.eq.s32.totalorder %s17, 1
    %p167 = por %p165, %p166
    %p168 = scmp.ne.s32.totalorder %s159, %s160
    %p169 = scmp.eq.s32.totalorder %s17, 0
    %p170 = por %p168, %p169
    %p171 = scmp.ne.s32.totalorder %s159, %s160
    %p172 = scmp.eq.s32.totalorder %s18, 1
    %p173 = por %p171, %p172
    %p175 = scmp.ne.s32.totalorder %s160, %s174
    %p176 = scmp.eq.s32.totalorder %s18, 0
    %p177 = por %p175, %p176
    %s178 = ssub.s32 %s19, %s31
    %s179 = ssub.s32 %s20, %s27
    %s180 = sor.u32 %s178, %s179
    %p181 = scmp.eq.s32.totalorder %s180, 0
    %s183 = sadd.s32 %s182, 1
    %s184 = scalar_select %p181, %s182, %s183
    %p187 = pneg %p181
    %p188 = scmp.eq.s32.totalorder %s12, 1
    %p189 = por %p187, %p188
    %p190 = scmp.ne.s32.totalorder %s182, %s185
    %p191 = scmp.eq.s32.totalorder %s12, 0
    %p192 = por %p190, %p191
    %p193 = scmp.ne.s32.totalorder %s182, %s185
    %p194 = scmp.eq.s32.totalorder %s17, 1
    %p195 = por %p193, %p194
    %p196 = scmp.ne.s32.totalorder %s185, %s186
    %p197 = scmp.eq.s32.totalorder %s17, 0
    %p198 = por %p196, %p197
    %p199 = scmp.ne.s32.totalorder %s185, %s186
    %p200 = scmp.eq.s32.totalorder %s18, 1
    %p201 = por %p199, %p200
    %p203 = scmp.ne.s32.totalorder %s186, %s202
    %p204 = scmp.eq.s32.totalorder %s18, 0
    %p205 = por %p203, %p204
    %p206 = scmp.le.s32.totalorder 1, %s12
    %p207 = scmp.lt.s32.totalorder %s12, 3
    %p208 = pnand %p206, %p207
    %p209 = pneg %p208
    // Predicated region
    $region9: #{gxl_conv1d_subsampling2.1} parent=5 // pred_check
      _
    $region10: #{gxl_conv1d_subsampling2.1} parent=5 // pred_check_branch
      %211 = sbr.rel (%p208) target = $region12
    $region11: #{gxl_conv1d_subsampling2.1} parent=5 // pred_region
      %s212 = ssub.s32 %s12, 1
      // Predicated region
      $region13: #{gxl_conv1d_subsampling2.1} parent=11 // pred_check
        %p213 = pneg %p107
      $region14: #{gxl_conv1d_subsampling2.1} parent=11 // pred_check_branch
        %215 = sbr.rel (%p213) target = $region16
      $region15: #{gxl_conv1d_subsampling2.1} parent=11 // pred_region
        _
      $region16: #{gxl_conv1d_subsampling2.1} parent=11 // pred_fallthru
        _
      // Predicated region
      $region17: #{gxl_conv1d_subsampling2.1} parent=11 // pred_check
        %p216 = pneg %p128
      $region18: #{gxl_conv1d_subsampling2.1} parent=11 // pred_check_branch
        %218 = sbr.rel (%p216) target = $region20
      $region19: #{gxl_conv1d_subsampling2.1} parent=11 // pred_region
        _
      $region20: #{gxl_conv1d_subsampling2.1} parent=11 // pred_fallthru
        _
      // Predicated region
      $region21: #{gxl_conv1d_subsampling2.1} parent=11 // pred_check
        %p219 = pneg %p149
      $region22: #{gxl_conv1d_subsampling2.1} parent=11 // pred_check_branch
        %221 = sbr.rel (%p219) target = $region24
      $region23: #{gxl_conv1d_subsampling2.1} parent=11 // pred_region
        _
      $region24: #{gxl_conv1d_subsampling2.1} parent=11 // pred_fallthru
        _
      // Predicated region
      $region25: #{gxl_conv1d_subsampling2.1} parent=11 // pred_check
        %p222 = pneg %p170
      $region26: #{gxl_conv1d_subsampling2.1} parent=11 // pred_check_branch
        %224 = sbr.rel (%p222) target = $region28
      $region27: #{gxl_conv1d_subsampling2.1} parent=11 // pred_region
        _
      $region28: #{gxl_conv1d_subsampling2.1} parent=11 // pred_fallthru
        _
    $region12: #{gxl_conv1d_subsampling2.1} parent=5 // pred_fallthru
      _
    %p225 = scmp.lt.s32.totalorder %s12, 2
    // Predicated region
    $region29: #{gxl_conv1d_subsampling2.1} parent=5 // pred_check
      %p226 = pneg %p225
    $region30: #{gxl_conv1d_subsampling2.1} parent=5 // pred_check_branch
      %228 = sbr.rel (%p226) target = $region32
    $region31: #{gxl_conv1d_subsampling2.1} parent=5 // pred_region
      // Predicated region
      $region33: #{gxl_conv1d_subsampling2.1} parent=31 // pred_check
        %p229 = pneg %p46
      $region34: #{gxl_conv1d_subsampling2.1} parent=31 // pred_check_branch
        %231 = sbr.rel (%p229) target = $region36
      $region35: #{gxl_conv1d_subsampling2.1} parent=31 // pred_region
        %s232 = smul.u32 2, %s20
        %p233 = scmp.lt.s32.totalorder %s19, 1
        %s234 = scalar_select %p233, %s19, 1
        %p235 = scmp.lt.s32.totalorder %s232, 1
        %s236 = scalar_select %p235, %s232, 1
        %s237 = smul.addr %s234, 2
        %s238 = sadd.s32 %s236, %s237
        %s239 = smul.addr %s238, 4
        %s240 = scalar_lea.vmem %s0, %s239
        %s241 = smul.u32 2, %s20
      $region36: #{gxl_conv1d_subsampling2.1} parent=31 // pred_fallthru
        _
      // Predicated region
      $region37: #{gxl_conv1d_subsampling2.1} parent=31 // pred_check
        %p242 = pneg %p80
      $region38: #{gxl_conv1d_subsampling2.1} parent=31 // pred_check_branch
        %244 = sbr.rel (%p242) target = $region40
      $region39: #{gxl_conv1d_subsampling2.1} parent=31 // pred_region
        %s245 = sadd.s32 %s20, 1
        %p246 = scmp.lt.s32.totalorder %s245, 0
        %s247 = scalar_select %p246, %s245, 0
        %s248 = smul.u32 2, %s247
        %p249 = scmp.lt.s32.totalorder %s19, 1
        %s250 = scalar_select %p249, %s19, 1
        %p251 = scmp.lt.s32.totalorder %s248, 1
        %s252 = scalar_select %p251, %s248, 1
        %s253 = smul.addr %s250, 2
        %s254 = sadd.s32 %s252, %s253
        %s255 = smul.addr %s254, 4
        %s256 = scalar_lea.vmem %s1, %s255
        %s257 = sadd.s32 %s20, 1
        %p258 = scmp.lt.s32.totalorder %s257, 0
        %s259 = scalar_select %p258, %s257, 0
        %s260 = smul.u32 2, %s259
      $region40: #{gxl_conv1d_subsampling2.1} parent=31 // pred_fallthru
        _
    $region32: #{gxl_conv1d_subsampling2.1} parent=5 // pred_fallthru
      _
    %p261 = scmp.le.s32.totalorder 1, %s12
    %p262 = scmp.lt.s32.totalorder %s12, 3
    %p263 = pnand %p261, %p262
    %p264 = pneg %p263
    // Predicated region
    $region41: #{gxl_conv1d_subsampling2.1} parent=5 // pred_check
      _
    $region42: #{gxl_conv1d_subsampling2.1} parent=5 // pred_check_branch
      %266 = sbr.rel (%p263) target = $region44
    $region43: #{gxl_conv1d_subsampling2.1} parent=5 // pred_region
      %s267 = ssub.s32 %s12, 1
      %s268 = smul.u32 2, %s22
      %p269 = scmp.lt.s32.totalorder %s21, 1
      %s270 = scalar_select %p269, %s21, 1
      %p271 = scmp.lt.s32.totalorder %s268, 1
      %s272 = scalar_select %p271, %s268, 1
      %s273 = smul.addr %s270, 2
      %s274 = sadd.s32 %s272, %s273
      %s275 = smul.addr %s274, 4
      %s276 = scalar_lea.vmem %s0, %s275
      %p277 = pneg %p52
      %p278 = pneg %p49
      %s279 = sadd.s32 %s22, 1
      %p280 = scmp.lt.s32.totalorder %s279, 0
      %s281 = scalar_select %p280, %s279, 0
      %s282 = smul.u32 2, %s281
      %p283 = scmp.lt.s32.totalorder %s21, 1
      %s284 = scalar_select %p283, %s21, 1
      %p285 = scmp.lt.s32.totalorder %s282, 1
      %s286 = scalar_select %p285, %s282, 1
      %s287 = smul.addr %s284, 2
      %s288 = sadd.s32 %s286, %s287
      %s289 = smul.addr %s288, 4
      %s290 = scalar_lea.vmem %s1, %s289
      %p291 = pneg %p86
      %p292 = pneg %p83
      %p293 = pneg %p107
      %p294 = pneg %p104
      %p295 = pneg %p128
      %p296 = pneg %p125
      %p297 = pneg %p149
      %p298 = pneg %p146
      %p299 = pneg %p170
      %p300 = pneg %p167
      %p301 = pneg %p198
      %p302 = pneg %p195
      %p303 = scmp.lt.s32.totalorder %s21, 1
      %s304 = scalar_select %p303, %s21, 1
      %p305 = scmp.lt.s32.totalorder %s22, 0
      %s306 = scalar_select %p305, %s22, 0
      %s307 = sadd.s32 %s306, %s304
      %s308 = smul.addr %s307, 4
      %s309 = scalar_lea.vmem %s6, %s308
      %s310 = smul.u32 2, %s22
      %p311 = scmp.lt.s32.totalorder %s21, 1
      %s312 = scalar_select %p311, %s21, 1
      %p313 = scmp.lt.s32.totalorder %s310, 1
      %s314 = scalar_select %p313, %s310, 1
      %s315 = smul.addr %s312, 2
      %s316 = sadd.s32 %s314, %s315
      %s317 = smul.addr %s316, 4
      %s318 = scalar_lea.vmem %s0, %s317
      %s319 = smul.u32 2, %s22
      %s320 = sadd.s32 %s22, 1
      %p321 = scmp.lt.s32.totalorder %s320, 0
      %s322 = scalar_select %p321, %s320, 0
      %s323 = smul.u32 2, %s322
      %p324 = scmp.lt.s32.totalorder %s21, 1
      %s325 = scalar_select %p324, %s21, 1
      %p326 = scmp.lt.s32.totalorder %s323, 1
      %s327 = scalar_select %p326, %s323, 1
      %s328 = smul.addr %s325, 2
      %s329 = sadd.s32 %s327, %s328
      %s330 = smul.addr %s329, 4
      %s331 = scalar_lea.vmem %s1, %s330
      %s332 = sadd.s32 %s22, 1
      %p333 = scmp.lt.s32.totalorder %s332, 0
      %s334 = scalar_select %p333, %s332, 0
      %s335 = smul.u32 2, %s334
      %p336 = scmp.lt.s32.totalorder %s21, 1
      %s337 = scalar_select %p336, %s21, 1
      %p338 = scmp.lt.s32.totalorder %s22, 0
      %s339 = scalar_select %p338, %s22, 0
      %s340 = sadd.s32 %s339, %s337
      %s341 = smul.addr %s340, 4
      %s342 = scalar_lea.vmem %s6, %s341
      %v344 = vld [vmem:[%s318] sm:$0xf]
      %v345 = vld [vmem:[%s318 + $0x4] sm:$0xf]
      %v346 = vunpack.c.l.bf16 %v344
      %v347 = vunpack.c.l.bf16 %v345
      %vm348 = vcmask 261120
      %349 = vst.msk [vmem:[#allocation2] sm:$0xff] %vm348, %v346
      %350 = vst.msk [vmem:[#allocation2 + $0x8] sm:$0xff] %vm348, %v347
      %v351 = vld [vmem:[%s331] sm:$0xf]
      %v352 = vunpack.c.l.bf16 %v351
      %vm353 = vcmask 256000
      %354 = vst.msk [vmem:[#allocation2 + $0x10] sm:$0x7] %vm353, %v352
      %v355 = vld [vmem:[#allocation2] ss:$2 sm:$0xff]
      %s356 = scalar_lea.vmem [#allocation2], 16
      %v357 = vld [vmem:[%s356] ss:$2 sm:$0x3]
      %v358 = vpack.c.bf16 %v357, %v355
      %vm359 = vcmask 258048
      %360 = vst.msk [vmem:[#allocation3] sm:$0x1f] %vm359, %v358
      %s361 = scalar_lea.vmem [#allocation2], 1
      %v362 = vld [vmem:[%s361] ss:$2 sm:$0xff]
      %s363 = scalar_lea.vmem [#allocation2], 17
      %v364 = vld [vmem:[%s363] ss:$2 sm:$0x1]
      %v365 = vpack.c.bf16 %v364, %v362
      %vm366 = vcmask 258048
      %vm367 = vsmask.f32 4352
      %vm368 = vmand %vm366, %vm367
      %v369 = vld [vmem:[#allocation4] sm:$0x1f]
      %v370 = vsel %vm368, %v365, %v369
      %371 = vst [vmem:[#allocation4] sm:$0x1f] %v370
      %v372 = vld [vmem:[%s2] sm:$0xf]
      %v373 = vld [vmem:[%s2 + $0x4] sm:$0xf]
      %v374 = vld [vmem:[%s2 + $0x8] sm:$0xf]
      %v375 = vld [vmem:[%s2 + $0xc] sm:$0xf]
      %v376 = vld [vmem:[%s2 + $0x10] sm:$0xf]
      %v377 = vld [vmem:[%s2 + $0x14] sm:$0xf]
      %v378 = vld [vmem:[%s2 + $0x18] sm:$0xf]
      %v379 = vld [vmem:[%s2 + $0x1c] sm:$0xf]
      %v380 = vld [vmem:[%s2 + $0x20] sm:$0xf]
      %v381 = vld [vmem:[%s2 + $0x24] sm:$0xf]
      %v382 = vld [vmem:[%s2 + $0x28] sm:$0xf]
      %v383 = vld [vmem:[%s2 + $0x2c] sm:$0xf]
      %v384 = vld [vmem:[#allocation3] sm:$0x1f]
      %v385 = vld [vmem:[#allocation4] sm:$0x1f]
      %v390 = vunpack.c.l.b16 %v376
      %v391 = vunpack.c.l.b16 %v377
      %v392 = vunpack.c.l.b16 %v378
      %v393 = vunpack.c.l.b16 %v379
      %v394 = vpack.c.b16 %v391, %v390
      %v395 = vpack.c.b16 %v393, %v392
      %v399 = vsel %vm348, %v385, 0
      %401 = vmatprep.subr.bf16.mxu0 0
      %402 = vmatpush1.bf16.msra.mxu0 %v394
      %403 = vmatprep.subr.bf16.mxu0 0
      %404 = vmatpush1.bf16.msra.mxu0 %v395
      %405 = vmatprep.subr.bf16.mxu0 0
      %406 = vmatpush1.bf16.msra.mxu0 0
      %407 = vmatprep.subr.bf16.mxu0 0
      %408 = vmatpush1.bf16.msra.mxu0 0
      %409 = vmatprep.subr.bf16.mxu0 0
      %410 = vmatpush1.bf16.msra.mxu0 0
      %411 = vmatprep.subr.bf16.mxu0 0
      %412 = vmatpush1.bf16.msra.mxu0 0
      %413 = vmatprep.subr.bf16.mxu0 0
      %414 = vmatpush1.bf16.msra.mxu0 0
      %415 = vmatprep.subr.bf16.mxu0 0
      %416 = vmatpush1.bf16.msra.mxu0 0
      %417 = vmatprep.subr.bf16.mxu0 0
      %418 = vmatpush1.bf16.msra.mxu0 0
      %419 = vmatprep.subr.bf16.mxu0 0
      %420 = vmatpush1.bf16.msra.mxu0 0
      %421 = vmatprep.subr.bf16.mxu0 0
      %422 = vmatpush1.bf16.msra.mxu0 0
      %423 = vmatprep.subr.bf16.mxu0 0
      %424 = vmatpush1.bf16.msra.mxu0 0
      %425 = vmatprep.subr.bf16.mxu0 0
      %426 = vmatpush1.bf16.msra.mxu0 0
      %427 = vmatprep.subr.bf16.mxu0 0
      %428 = vmatpush1.bf16.msra.mxu0 0
      %429 = vmatprep.subr.bf16.mxu0 0
      %430 = vmatpush1.bf16.msra.mxu0 0
      %431 = vmatprep.subr.bf16.mxu0 0
      %432 = vmatpush1.bf16.msra.mxu0 0
      %433 = vmatprep.mubr.bf16.mxu0 0
      %434 = vmatmul.mubr.bf16.gmra.mrb[0].mxu0 %v399
      %v435 = vpop.f32.mrb[0].mxu0
      %v436 = vadd.f32 0.0, %v435
      %v437 = vpop.f32.mrb[0].mxu0
      %v438 = vpop.f32.mrb[0].mxu0
      %v439 = vadd.f32 0.0, %v438
      %v440 = vpop.f32.mrb[0].mxu0
      %441 = vdwg.mxu0
      %v446 = vunpack.c.l.b16 %v372
      %v447 = vunpack.c.l.b16 %v373
      %v448 = vunpack.c.l.b16 %v374
      %v449 = vunpack.c.l.b16 %v375
      %v450 = vpack.c.b16 %v447, %v446
      %v451 = vpack.c.b16 %v449, %v448
      %v455 = vsel %vm348, %v384, 0
      %457 = vmatprep.subr.bf16.mxu0 0
      %458 = vmatpush1.bf16.msra.mxu0 %v450
      %459 = vmatprep.subr.bf16.mxu0 0
      %460 = vmatpush1.bf16.msra.mxu0 %v451
      %461 = vmatprep.subr.bf16.mxu0 0
      %462 = vmatpush1.bf16.msra.mxu0 0
      %463 = vmatprep.subr.bf16.mxu0 0
      %464 = vmatpush1.bf16.msra.mxu0 0
      %465 = vmatprep.subr.bf16.mxu0 0
      %466 = vmatpush1.bf16.msra.mxu0 0
      %467 = vmatprep.subr.bf16.mxu0 0
      %468 = vmatpush1.bf16.msra.mxu0 0
      %469 = vmatprep.subr.bf16.mxu0 0
      %470 = vmatpush1.bf16.msra.mxu0 0
      %471 = vmatprep.subr.bf16.mxu0 0
      %472 = vmatpush1.bf16.msra.mxu0 0
      %473 = vmatprep.subr.bf16.mxu0 0
      %474 = vmatpush1.bf16.msra.mxu0 0
      %475 = vmatprep.subr.bf16.mxu0 0
      %476 = vmatpush1.bf16.msra.mxu0 0
      %477 = vmatprep.subr.bf16.mxu0 0
      %478 = vmatpush1.bf16.msra.mxu0 0
      %479 = vmatprep.subr.bf16.mxu0 0
      %480 = vmatpush1.bf16.msra.mxu0 0
      %481 = vmatprep.subr.bf16.mxu0 0
      %482 = vmatpush1.bf16.msra.mxu0 0
      %483 = vmatprep.subr.bf16.mxu0 0
      %484 = vmatpush1.bf16.msra.mxu0 0
      %485 = vmatprep.subr.bf16.mxu0 0
      %486 = vmatpush1.bf16.msra.mxu0 0
      %487 = vmatprep.subr.bf16.mxu0 0
      %488 = vmatpush1.bf16.msra.mxu0 0
      %489 = vmatprep.mubr.bf16.mxu0 0
      %490 = vmatmul.mubr.bf16.gmra.mrb[0].mxu0 %v455
      %v491 = vpop.f32.mrb[0].mxu0
      %v492 = vadd.f32 %v436, %v491
      %v493 = vpop.f32.mrb[0].mxu0
      %v494 = vpop.f32.mrb[0].mxu0
      %v495 = vadd.f32 %v439, %v494
      %v496 = vpop.f32.mrb[0].mxu0
      %497 = vdwg.mxu0
      %v498 = vshrl.u32 %v384, 16
      %v500 = vshll.u32 %v384, 16
      %v502 = vrot.slane %v500, 1
      %v503 = vor.u32 %v498, %v502
      %v508 = vunpack.c.l.b16 %v380
      %v509 = vunpack.c.l.b16 %v381
      %v510 = vunpack.c.l.b16 %v382
      %v511 = vunpack.c.l.b16 %v383
      %v512 = vpack.c.b16 %v509, %v508
      %v513 = vpack.c.b16 %v511, %v510
      %v517 = vsel %vm348, %v503, 0
      %519 = vmatprep.subr.bf16.mxu0 0
      %520 = vmatpush1.bf16.msra.mxu0 %v512
      %521 = vmatprep.subr.bf16.mxu0 0
      %522 = vmatpush1.bf16.msra.mxu0 %v513
      %523 = vmatprep.subr.bf16.mxu0 0
      %524 = vmatpush1.bf16.msra.mxu0 0
      %525 = vmatprep.subr.bf16.mxu0 0
      %526 = vmatpush1.bf16.msra.mxu0 0
      %527 = vmatprep.subr.bf16.mxu0 0
      %528 = vmatpush1.bf16.msra.mxu0 0
      %529 = vmatprep.subr.bf16.mxu0 0
      %530 = vmatpush1.bf16.msra.mxu0 0
      %531 = vmatprep.subr.bf16.mxu0 0
      %532 = vmatpush1.bf16.msra.mxu0 0
      %533 = vmatprep.subr.bf16.mxu0 0
      %534 = vmatpush1.bf16.msra.mxu0 0
      %535 = vmatprep.subr.bf16.mxu0 0
      %536 = vmatpush1.bf16.msra.mxu0 0
      %537 = vmatprep.subr.bf16.mxu0 0
      %538 = vmatpush1.bf16.msra.mxu0 0
      %539 = vmatprep.subr.bf16.mxu0 0
      %540 = vmatpush1.bf16.msra.mxu0 0
      %541 = vmatprep.subr.bf16.mxu0 0
      %542 = vmatpush1.bf16.msra.mxu0 0
      %543 = vmatprep.subr.bf16.mxu0 0
      %544 = vmatpush1.bf16.msra.mxu0 0
      %545 = vmatprep.subr.bf16.mxu0 0
      %546 = vmatpush1.bf16.msra.mxu0 0
      %547 = vmatprep.subr.bf16.mxu0 0
      %548 = vmatpush1.bf16.msra.mxu0 0
      %549 = vmatprep.subr.bf16.mxu0 0
      %550 = vmatpush1.bf16.msra.mxu0 0
      %551 = vmatprep.mubr.bf16.mxu0 0
      %552 = vmatmul.mubr.bf16.gmra.mrb[0].mxu0 %v517
      %v553 = vpop.f32.mrb[0].mxu0
      %v554 = vadd.f32 0.0, %v553
      %v555 = vpop.f32.mrb[0].mxu0
      %v556 = vpop.f32.mrb[0].mxu0
      %v557 = vadd.f32 0.0, %v556
      %v558 = vpop.f32.mrb[0].mxu0
      %559 = vdwg.mxu0
      %v560 = vadd.f32 %v492, %v554
      %v561 = vadd.f32 %v495, %v557
      %v562 = vld [vmem:[%s3] sm:$0x1]
      %v564 = vlaneseq
      %v565 = vshrl.u32 %v564, 7
      %v566 = vsub.s32 0, %v565
      %v567 = vrot.slane %v562, %v566
      %v569 = vadd.f32 %v560, %v567
      %v570 = vadd.f32 %v561, %v567
      %v571 = vand.u32 2147483647, %v569
      %v572 = vand.u32 2147483647, %v570
      %v573 = vmul.f32 %v571, 0.70710677
      %v574 = vmul.f32 %v572, 0.70710677
      %v575 = vmul.f32 %v573, 0.3275911
      %v576 = vmul.f32 %v574, 0.3275911
      %v577 = vadd.f32 %v575, 1.0
      %v578 = vadd.f32 %v576, 1.0
      %v579 = vrcp.pop %v577
      %v580 = vrcp.pop %v578
      %v581 = vmul.f32 %v579, 1.0614054
      %v582 = vmul.f32 %v580, 1.0614054
      %v583 = vsub.f32 %v581, 1.4531521
      %v584 = vsub.f32 %v582, 1.4531521
      %v585 = vmul.f32 %v583, %v579
      %v586 = vmul.f32 %v584, %v580
      %v587 = vadd.f32 %v585, 1.4214138
      %v588 = vadd.f32 %v586, 1.4214138
      %v589 = vmul.f32 %v587, %v579
      %v590 = vmul.f32 %v588, %v580
      %v591 = vsub.f32 %v589, 0.28449672
      %v592 = vsub.f32 %v590, 0.28449672
      %v593 = vmul.f32 %v591, %v579
      %v594 = vmul.f32 %v592, %v580
      %v595 = vadd.f32 %v593, 0.2548296
      %v596 = vadd.f32 %v594, 0.2548296
      %v597 = vmul.f32 %v595, %v579
      %v598 = vmul.f32 %v596, %v580
      %v599 = vsub.f32 0.0, %v573
      %v600 = vsub.f32 0.0, %v574
      %v601 = vmul.f32 %v599, %v573
      %v602 = vmul.f32 %v600, %v574
      %v603 = vmul.f32 %v601, 1.442695
      %v604 = vpow.pop %v603
      %v605 = vmul.f32 %v602, 1.442695
      %v606 = vpow.pop %v605
      %v607 = vmul.f32 %v597, %v604
      %v608 = vmul.f32 %v598, %v606
      %v609 = vsub.f32 1.0, %v607
      %v610 = vsub.f32 1.0, %v608
      %vm611 = vcmp.lt.f32.partialorder %v569, 0.0
      %vm612 = vcmp.lt.f32.partialorder %v570, 0.0
      %v613 = vsub.f32 0.0, %v609
      %v614 = vsub.f32 0.0, %v610
      %v615 = vsel %vm611, %v613, %v609
      %v616 = vsel %vm612, %v614, %v610
      %v617 = vmul.f32 %v569, 0.5
      %v618 = vmul.f32 %v570, 0.5
      %v619 = vadd.f32 %v615, 1.0
      %v620 = vadd.f32 %v616, 1.0
      %v621 = vmul.f32 %v617, %v619
      %v622 = vmul.f32 %v618, %v620
      %v623 = vpack.c.bf16 %v622, %v621
      %vm624 = vcmask 1044480
      %vm625 = vmand %vm624, %vm367
      %v626 = vld [vmem:[#allocation5] sm:$0x1f]
      %v627 = vsel %vm625, %v623, %v626
      %628 = vst [vmem:[#allocation5] sm:$0x1f] %v627
      %v629 = vld [vmem:[#allocation4] sm:$0xf]
      %v630 = vld [vmem:[#allocation3] sm:$0x1f]
      %v632 = vshrl.u32 %v630, 16
      %v634 = vshll.u32 %v630, 16
      %v636 = vrot.slane %v634, 1
      %v637 = vor.u32 %v632, %v636
      %v639 = vsel %vm348, %v637, 0
      %641 = vmatprep.subr.bf16.mxu0 0
      %642 = vmatpush1.bf16.msra.mxu0 %v394
      %643 = vmatprep.subr.bf16.mxu0 0
      %644 = vmatpush1.bf16.msra.mxu0 %v395
      %645 = vmatprep.subr.bf16.mxu0 0
      %646 = vmatpush1.bf16.msra.mxu0 0
      %647 = vmatprep.subr.bf16.mxu0 0
      %648 = vmatpush1.bf16.msra.mxu0 0
      %649 = vmatprep.subr.bf16.mxu0 0
      %650 = vmatpush1.bf16.msra.mxu0 0
      %651 = vmatprep.subr.bf16.mxu0 0
      %652 = vmatpush1.bf16.msra.mxu0 0
      %653 = vmatprep.subr.bf16.mxu0 0
      %654 = vmatpush1.bf16.msra.mxu0 0
      %655 = vmatprep.subr.bf16.mxu0 0
      %656 = vmatpush1.bf16.msra.mxu0 0
      %657 = vmatprep.subr.bf16.mxu0 0
      %658 = vmatpush1.bf16.msra.mxu0 0
      %659 = vmatprep.subr.bf16.mxu0 0
      %660 = vmatpush1.bf16.msra.mxu0 0
      %661 = vmatprep.subr.bf16.mxu0 0
      %662 = vmatpush1.bf16.msra.mxu0 0
      %663 = vmatprep.subr.bf16.mxu0 0
      %664 = vmatpush1.bf16.msra.mxu0 0
      %665 = vmatprep.subr.bf16.mxu0 0
      %666 = vmatpush1.bf16.msra.mxu0 0
      %667 = vmatprep.subr.bf16.mxu0 0
      %668 = vmatpush1.bf16.msra.mxu0 0
      %669 = vmatprep.subr.bf16.mxu0 0
      %670 = vmatpush1.bf16.msra.mxu0 0
      %671 = vmatprep.subr.bf16.mxu0 0
      %672 = vmatpush1.bf16.msra.mxu0 0
      %673 = vmatprep.mubr.bf16.mxu0 0
      %674 = vmatmul.mubr.bf16.gmra.mrb[0].mxu0 %v639
      %v675 = vpop.f32.mrb[0].mxu0
      %v676 = vadd.f32 0.0, %v675
      %v677 = vpop.f32.mrb[0].mxu0
      %v678 = vpop.f32.mrb[0].mxu0
      %v679 = vpop.f32.mrb[0].mxu0
      %680 = vdwg.mxu0
      %v682 = vsel %vm348, %v629, 0
      %684 = vmatprep.subr.bf16.mxu0 0
      %685 = vmatpush1.bf16.msra.mxu0 %v450
      %686 = vmatprep.subr.bf16.mxu0 0
      %687 = vmatpush1.bf16.msra.mxu0 %v451
      %688 = vmatprep.subr.bf16.mxu0 0
      %689 = vmatpush1.bf16.msra.mxu0 0
      %690 = vmatprep.subr.bf16.mxu0 0
      %691 = vmatpush1.bf16.msra.mxu0 0
      %692 = vmatprep.subr.bf16.mxu0 0
      %693 = vmatpush1.bf16.msra.mxu0 0
      %694 = vmatprep.subr.bf16.mxu0 0
      %695 = vmatpush1.bf16.msra.mxu0 0
      %696 = vmatprep.subr.bf16.mxu0 0
      %697 = vmatpush1.bf16.msra.mxu0 0
      %698 = vmatprep.subr.bf16.mxu0 0
      %699 = vmatpush1.bf16.msra.mxu0 0
      %700 = vmatprep.subr.bf16.mxu0 0
      %701 = vmatpush1.bf16.msra.mxu0 0
      %702 = vmatprep.subr.bf16.mxu0 0
      %703 = vmatpush1.bf16.msra.mxu0 0
      %704 = vmatprep.subr.bf16.mxu0 0
      %705 = vmatpush1.bf16.msra.mxu0 0
      %706 = vmatprep.subr.bf16.mxu0 0
      %707 = vmatpush1.bf16.msra.mxu0 0
      %708 = vmatprep.subr.bf16.mxu0 0
      %709 = vmatpush1.bf16.msra.mxu0 0
      %710 = vmatprep.subr.bf16.mxu0 0
      %711 = vmatpush1.bf16.msra.mxu0 0
      %712 = vmatprep.subr.bf16.mxu0 0
      %713 = vmatpush1.bf16.msra.mxu0 0
      %714 = vmatprep.subr.bf16.mxu0 0
      %715 = vmatpush1.bf16.msra.mxu0 0
      %716 = vmatprep.mubr.bf16.mxu0 0
      %717 = vmatmul.mubr.bf16.gmra.mrb[0].mxu0 %v682
      %v718 = vpop.f32.mrb[0].mxu0
      %v719 = vadd.f32 %v676, %v718
      %v720 = vpop.f32.mrb[0].mxu0
      %v721 = vpop.f32.mrb[0].mxu0
      %v722 = vpop.f32.mrb[0].mxu0
      %723 = vdwg.mxu0
      %v724 = vld [vmem:[#allocation4] sm:$0x1f]
      %v726 = vshrl.u32 %v724, 16
      %v728 = vshll.u32 %v724, 16
      %v730 = vrot.slane %v728, 1
      %v731 = vor.u32 %v726, %v730
      %v733 = vsel %vm348, %v731, 0
      %735 = vmatprep.subr.bf16.mxu0 0
      %736 = vmatpush1.bf16.msra.mxu0 %v512
      %737 = vmatprep.subr.bf16.mxu0 0
      %738 = vmatpush1.bf16.msra.mxu0 %v513
      %739 = vmatprep.subr.bf16.mxu0 0
      %740 = vmatpush1.bf16.msra.mxu0 0
      %741 = vmatprep.subr.bf16.mxu0 0
      %742 = vmatpush1.bf16.msra.mxu0 0
      %743 = vmatprep.subr.bf16.mxu0 0
      %744 = vmatpush1.bf16.msra.mxu0 0
      %745 = vmatprep.subr.bf16.mxu0 0
      %746 = vmatpush1.bf16.msra.mxu0 0
      %747 = vmatprep.subr.bf16.mxu0 0
      %748 = vmatpush1.bf16.msra.mxu0 0
      %749 = vmatprep.subr.bf16.mxu0 0
      %750 = vmatpush1.bf16.msra.mxu0 0
      %751 = vmatprep.subr.bf16.mxu0 0
      %752 = vmatpush1.bf16.msra.mxu0 0
      %753 = vmatprep.subr.bf16.mxu0 0
      %754 = vmatpush1.bf16.msra.mxu0 0
      %755 = vmatprep.subr.bf16.mxu0 0
      %756 = vmatpush1.bf16.msra.mxu0 0
      %757 = vmatprep.subr.bf16.mxu0 0
      %758 = vmatpush1.bf16.msra.mxu0 0
      %759 = vmatprep.subr.bf16.mxu0 0
      %760 = vmatpush1.bf16.msra.mxu0 0
      %761 = vmatprep.subr.bf16.mxu0 0
      %762 = vmatpush1.bf16.msra.mxu0 0
      %763 = vmatprep.subr.bf16.mxu0 0
      %764 = vmatpush1.bf16.msra.mxu0 0
      %765 = vmatprep.subr.bf16.mxu0 0
      %766 = vmatpush1.bf16.msra.mxu0 0
      %767 = vmatprep.mubr.bf16.mxu0 0
      %768 = vmatmul.mubr.bf16.gmra.mrb[0].mxu0 %v733
      %v769 = vpop.f32.mrb[0].mxu0
      %v770 = vadd.f32 0.0, %v769
      %v771 = vpop.f32.mrb[0].mxu0
      %v772 = vpop.f32.mrb[0].mxu0
      %v773 = vpop.f32.mrb[0].mxu0
      %774 = vdwg.mxu0
      %v775 = vadd.f32 %v719, %v770
      %v776 = vld [vmem:[%s3] sm:$0x1]
      %v778 = vlaneseq
      %v779 = vshrl.u32 %v778, 7
      %v780 = vsub.s32 0, %v779
      %v781 = vrot.slane %v776, %v780
      %v783 = vadd.f32 %v775, %v781
      %v784 = vand.u32 2147483647, %v783
      %v785 = vmul.f32 %v784, 0.70710677
      %v786 = vmul.f32 %v785, 0.3275911
      %v787 = vadd.f32 %v786, 1.0
      %v788 = vrcp.pop %v787
      %v789 = vmul.f32 %v788, 1.0614054
      %v790 = vsub.f32 %v789, 1.4531521
      %v791 = vmul.f32 %v790, %v788
      %v792 = vadd.f32 %v791, 1.4214138
      %v793 = vmul.f32 %v792, %v788
      %v794 = vsub.f32 %v793, 0.28449672
      %v795 = vmul.f32 %v794, %v788
      %v796 = vadd.f32 %v795, 0.2548296
      %v797 = vmul.f32 %v796, %v788
      %v798 = vsub.f32 0.0, %v785
      %v799 = vmul.f32 %v798, %v785
      %v800 = vmul.f32 %v799, 1.442695
      %v801 = vpow.pop %v800
      %v802 = vmul.f32 %v797, %v801
      %v803 = vsub.f32 1.0, %v802
      %vm804 = vcmp.lt.f32.partialorder %v783, 0.0
      %v805 = vsub.f32 0.0, %v803
      %v806 = vsel %vm804, %v805, %v803
      %v807 = vmul.f32 %v783, 0.5
      %v808 = vadd.f32 %v806, 1.0
      %v809 = vmul.f32 %v807, %v808
      %v810 = vpack.c.bf16 %v809, %v809
      %811 = vst [vmem:[#allocation5 + $0x8] sm:$0xf] %v810
      %v812 = vld [vmem:[#allocation5] sm:$0xf]
      %v813 = vld [vmem:[#allocation5 + $0x8] sm:$0xf]
      %v814 = vld [vmem:[%s4] sm:$0xf]
      %v815 = vld [vmem:[%s4 + $0x4] sm:$0xf]
      %v816 = vld [vmem:[%s4 + $0x8] sm:$0xf]
      %v817 = vld [vmem:[%s4 + $0xc] sm:$0xf]
      %v818 = vld [vmem:[%s4 + $0x10] sm:$0xf]
      %v819 = vld [vmem:[%s4 + $0x14] sm:$0xf]
      %v820 = vld [vmem:[%s4 + $0x18] sm:$0xf]
      %v821 = vld [vmem:[%s4 + $0x1c] sm:$0xf]
      %v822 = vld [vmem:[%s4 + $0x20] sm:$0xf]
      %v823 = vld [vmem:[%s4 + $0x24] sm:$0xf]
      %v824 = vld [vmem:[%s4 + $0x28] sm:$0xf]
      %v825 = vld [vmem:[%s4 + $0x2c] sm:$0xf]
      %v826 = vld [vmem:[%s4 + $0x30] sm:$0xf]
      %v827 = vld [vmem:[%s4 + $0x34] sm:$0xf]
      %v828 = vld [vmem:[%s4 + $0x38] sm:$0xf]
      %v829 = vld [vmem:[%s4 + $0x3c] sm:$0xf]
      %v830 = vld [vmem:[%s4 + $0x40] sm:$0xf]
      %v831 = vld [vmem:[%s4 + $0x44] sm:$0xf]
      %v832 = vld [vmem:[%s4 + $0x48] sm:$0xf]
      %v833 = vld [vmem:[%s4 + $0x4c] sm:$0xf]
      %v834 = vld [vmem:[%s4 + $0x50] sm:$0xf]
      %v835 = vld [vmem:[%s4 + $0x54] sm:$0xf]
      %v836 = vld [vmem:[%s4 + $0x58] sm:$0xf]
      %v837 = vld [vmem:[%s4 + $0x5c] sm:$0xf]
      %v838 = vld [vmem:[%s4 + $0x60] sm:$0xf]
      %v839 = vld [vmem:[%s4 + $0x64] sm:$0xf]
      %v840 = vld [vmem:[%s4 + $0x68] sm:$0xf]
      %v841 = vld [vmem:[%s4 + $0x6c] sm:$0xf]
      %v842 = vld [vmem:[%s4 + $0x70] sm:$0xf]
      %v843 = vld [vmem:[%s4 + $0x74] sm:$0xf]
      %v844 = vld [vmem:[%s4 + $0x78] sm:$0xf]
      %v845 = vld [vmem:[%s4 + $0x7c] sm:$0xf]
      %v846 = vld [vmem:[#allocation5] sm:$0x1f]
      %v847 = vld [vmem:[%s4 + $0x80] sm:$0xf]
      %v848 = vld [vmem:[%s4 + $0x84] sm:$0xf]
      %v849 = vld [vmem:[%s4 + $0x88] sm:$0xf]
      %v850 = vld [vmem:[%s4 + $0x8c] sm:$0xf]
      %v851 = vld [vmem:[%s4 + $0x90] sm:$0xf]
      %v852 = vld [vmem:[%s4 + $0x94] sm:$0xf]
      %v853 = vld [vmem:[%s4 + $0x98] sm:$0xf]
      %v854 = vld [vmem:[%s4 + $0x9c] sm:$0xf]
      %v855 = vld [vmem:[%s4 + $0xa0] sm:$0xf]
      %v856 = vld [vmem:[%s4 + $0xa4] sm:$0xf]
      %v857 = vld [vmem:[%s4 + $0xa8] sm:$0xf]
      %v858 = vld [vmem:[%s4 + $0xac] sm:$0xf]
      %v859 = vld [vmem:[%s4 + $0xb0] sm:$0xf]
      %v860 = vld [vmem:[%s4 + $0xb4] sm:$0xf]
      %v861 = vld [vmem:[%s4 + $0xb8] sm:$0xf]
      %v862 = vld [vmem:[%s4 + $0xbc] sm:$0xf]
      %v864 = vshrl.u32 %v846, 16
      %v866 = vshll.u32 %v846, 16
      %v868 = vrot.slane %v866, 1
      %v869 = vor.u32 %v864, %v868
      %v887 = vunpack.c.l.b16 %v847
      %v888 = vunpack.c.l.b16 %v848
      %v889 = vunpack.c.l.b16 %v849
      %v890 = vunpack.c.l.b16 %v850
      %v891 = vunpack.c.l.b16 %v851
      %v892 = vunpack.c.l.b16 %v852
      %v893 = vunpack.c.l.b16 %v853
      %v894 = vunpack.c.l.b16 %v854
      %v895 = vunpack.c.l.b16 %v855
      %v896 = vunpack.c.l.b16 %v856
      %v897 = vunpack.c.l.b16 %v857
      %v898 = vunpack.c.l.b16 %v858
      %v899 = vunpack.c.l.b16 %v859
      %v900 = vunpack.c.l.b16 %v860
      %v901 = vunpack.c.l.b16 %v861
      %v902 = vunpack.c.l.b16 %v862
      %v903 = vpack.c.b16 %v888, %v887
      %v904 = vpack.c.b16 %v890, %v889
      %v905 = vpack.c.b16 %v892, %v891
      %v906 = vpack.c.b16 %v894, %v893
      %v907 = vpack.c.b16 %v896, %v895
      %v908 = vpack.c.b16 %v898, %v897
      %v909 = vpack.c.b16 %v900, %v899
      %v910 = vpack.c.b16 %v902, %v901
      %919 = vmatprep.subr.bf16.mxu0 0
      %920 = vmatpush1.bf16.msra.mxu0 %v903
      %921 = vmatprep.subr.bf16.mxu0 0
      %922 = vmatpush1.bf16.msra.mxu0 %v904
      %923 = vmatprep.subr.bf16.mxu0 0
      %924 = vmatpush1.bf16.msra.mxu0 %v905
      %925 = vmatprep.subr.bf16.mxu0 0
      %926 = vmatpush1.bf16.msra.mxu0 %v906
      %927 = vmatprep.subr.bf16.mxu0 0
      %928 = vmatpush1.bf16.msra.mxu0 %v907
      %929 = vmatprep.subr.bf16.mxu0 0
      %930 = vmatpush1.bf16.msra.mxu0 %v908
      %931 = vmatprep.subr.bf16.mxu0 0
      %932 = vmatpush1.bf16.msra.mxu0 %v909
      %933 = vmatprep.subr.bf16.mxu0 0
      %934 = vmatpush1.bf16.msra.mxu0 %v910
      %935 = vmatprep.subr.bf16.mxu0 0
      %936 = vmatpush1.bf16.msra.mxu0 0
      %937 = vmatprep.subr.bf16.mxu0 0
      %938 = vmatpush1.bf16.msra.mxu0 0
      %939 = vmatprep.subr.bf16.mxu0 0
      %940 = vmatpush1.bf16.msra.mxu0 0
      %941 = vmatprep.subr.bf16.mxu0 0
      %942 = vmatpush1.bf16.msra.mxu0 0
      %943 = vmatprep.subr.bf16.mxu0 0
      %944 = vmatpush1.bf16.msra.mxu0 0
      %945 = vmatprep.subr.bf16.mxu0 0
      %946 = vmatpush1.bf16.msra.mxu0 0
      %947 = vmatprep.subr.bf16.mxu0 0
      %948 = vmatpush1.bf16.msra.mxu0 0
      %949 = vmatprep.subr.bf16.mxu0 0
      %950 = vmatpush1.bf16.msra.mxu0 0
      %951 = vmatprep.mubr.bf16.mxu0 0
      %952 = vmatmul.mubr.bf16.gmra.mrb[0].mxu0 %v869
      %v953 = vpop.f32.mrb[0].mxu0
      %v954 = vadd.f32 0.0, %v953
      %v955 = vpop.f32.mrb[0].mxu0
      %v956 = vpop.f32.mrb[0].mxu0
      %v957 = vpop.f32.mrb[0].mxu0
      %958 = vdwg.mxu0
      %v991 = vunpack.c.l.b16 %v814
      %v992 = vunpack.c.l.b16 %v815
      %v993 = vunpack.c.l.b16 %v816
      %v994 = vunpack.c.l.b16 %v817
      %v995 = vunpack.c.l.b16 %v818
      %v996 = vunpack.c.l.b16 %v819
      %v997 = vunpack.c.l.b16 %v820
      %v998 = vunpack.c.l.b16 %v821
      %v999 = vunpack.c.l.b16 %v822
      %v1000 = vunpack.c.l.b16 %v823
      %v1001 = vunpack.c.l.b16 %v824
      %v1002 = vunpack.c.l.b16 %v825
      %v1003 = vunpack.c.l.b16 %v826
      %v1004 = vunpack.c.l.b16 %v827
      %v1005 = vunpack.c.l.b16 %v828
      %v1006 = vunpack.c.l.b16 %v829
      %v1007 = vunpack.c.l.b16 %v830
      %v1008 = vunpack.c.l.b16 %v831
      %v1009 = vunpack.c.l.b16 %v832
      %v1010 = vunpack.c.l.b16 %v833
      %v1011 = vunpack.c.l.b16 %v834
      %v1012 = vunpack.c.l.b16 %v835
      %v1013 = vunpack.c.l.b16 %v836
      %v1014 = vunpack.c.l.b16 %v837
      %v1015 = vunpack.c.l.b16 %v838
      %v1016 = vunpack.c.l.b16 %v839
      %v1017 = vunpack.c.l.b16 %v840
      %v1018 = vunpack.c.l.b16 %v841
      %v1019 = vunpack.c.l.b16 %v842
      %v1020 = vunpack.c.l.b16 %v843
      %v1021 = vunpack.c.l.b16 %v844
      %v1022 = vunpack.c.l.b16 %v845
      %v1023 = vpack.c.b16 %v992, %v991
      %v1024 = vpack.c.b16 %v994, %v993
      %v1025 = vpack.c.b16 %v996, %v995
      %v1026 = vpack.c.b16 %v998, %v997
      %v1027 = vpack.c.b16 %v1000, %v999
      %v1028 = vpack.c.b16 %v1002, %v1001
      %v1029 = vpack.c.b16 %v1004, %v1003
      %v1030 = vpack.c.b16 %v1006, %v1005
      %v1031 = vpack.c.b16 %v1008, %v1007
      %v1032 = vpack.c.b16 %v1010, %v1009
      %v1033 = vpack.c.b16 %v1012, %v1011
      %v1034 = vpack.c.b16 %v1014, %v1013
      %v1035 = vpack.c.b16 %v1016, %v1015
      %v1036 = vpack.c.b16 %v1018, %v1017
      %v1037 = vpack.c.b16 %v1020, %v1019
      %v1038 = vpack.c.b16 %v1022, %v1021
      %1055 = vmatprep.subr.bf16.mxu0 0
      %1056 = vmatpush1.bf16.msra.mxu0 %v1023
      %1057 = vmatprep.subr.bf16.mxu0 0
      %1058 = vmatpush1.bf16.msra.mxu0 %v1024
      %1059 = vmatprep.subr.bf16.mxu0 0
      %1060 = vmatpush1.bf16.msra.mxu0 %v1025
      %1061 = vmatprep.subr.bf16.mxu0 0
      %1062 = vmatpush1.bf16.msra.mxu0 %v1026
      %1063 = vmatprep.subr.bf16.mxu0 0
      %1064 = vmatpush1.bf16.msra.mxu0 %v1027
      %1065 = vmatprep.subr.bf16.mxu0 0
      %1066 = vmatpush1.bf16.msra.mxu0 %v1028
      %1067 = vmatprep.subr.bf16.mxu0 0
      %1068 = vmatpush1.bf16.msra.mxu0 %v1029
      %1069 = vmatprep.subr.bf16.mxu0 0
      %1070 = vmatpush1.bf16.msra.mxu0 %v1030
      %1071 = vmatprep.subr.bf16.mxu0 0
      %1072 = vmatpush1.bf16.msra.mxu0 %v1031
      %1073 = vmatprep.subr.bf16.mxu0 0
      %1074 = vmatpush1.bf16.msra.mxu0 %v1032
      %1075 = vmatprep.subr.bf16.mxu0 0
      %1076 = vmatpush1.bf16.msra.mxu0 %v1033
      %1077 = vmatprep.subr.bf16.mxu0 0
      %1078 = vmatpush1.bf16.msra.mxu0 %v1034
      %1079 = vmatprep.subr.bf16.mxu0 0
      %1080 = vmatpush1.bf16.msra.mxu0 %v1035
      %1081 = vmatprep.subr.bf16.mxu0 0
      %1082 = vmatpush1.bf16.msra.mxu0 %v1036
      %1083 = vmatprep.subr.bf16.mxu0 0
      %1084 = vmatpush1.bf16.msra.mxu0 %v1037
      %1085 = vmatprep.subr.bf16.mxu0 0
      %1086 = vmatpush1.bf16.msra.mxu0 %v1038
      %1087 = vmatprep.mubr.bf16.mxu0 %v813
      %1088 = vmatmul.mubr.bf16.gmra.mrb[0].mxu0 %v812
      %v1089 = vpop.f32.mrb[0].mxu0
      %v1090 = vadd.f32 %v954, %v1089
      %v1091 = vpop.f32.mrb[0].mxu0
      %v1092 = vpop.f32.mrb[0].mxu0
      %v1093 = vpop.f32.mrb[0].mxu0
      %1094 = vdwg.mxu0
      %v1095 = vld [vmem:[%s5] sm:$0x1]
      %v1097 = vlaneseq
      %v1098 = vshrl.u32 %v1097, 7
      %v1099 = vsub.s32 0, %v1098
      %v1100 = vrot.slane %v1095, %v1099
      %v1102 = vadd.f32 %v1090, %v1100
      %v1103 = vand.u32 2147483647, %v1102
      %v1104 = vmul.f32 %v1103, 0.70710677
      %v1105 = vmul.f32 %v1104, 0.3275911
      %v1106 = vadd.f32 %v1105, 1.0
      %v1107 = vrcp.pop %v1106
      %v1108 = vmul.f32 %v1107, 1.0614054
      %v1109 = vsub.f32 %v1108, 1.4531521
      %v1110 = vmul.f32 %v1109, %v1107
      %v1111 = vadd.f32 %v1110, 1.4214138
      %v1112 = vmul.f32 %v1111, %v1107
      %v1113 = vsub.f32 %v1112, 0.28449672
      %v1114 = vmul.f32 %v1113, %v1107
      %v1115 = vadd.f32 %v1114, 0.2548296
      %v1116 = vmul.f32 %v1115, %v1107
      %v1117 = vsub.f32 0.0, %v1104
      %v1118 = vmul.f32 %v1117, %v1104
      %v1119 = vmul.f32 %v1118, 1.442695
      %v1120 = vpow.pop %v1119
      %v1121 = vmul.f32 %v1116, %v1120
      %v1122 = vsub.f32 1.0, %v1121
      %vm1123 = vcmp.lt.f32.partialorder %v1102, 0.0
      %v1124 = vsub.f32 0.0, %v1122
      %v1125 = vsel %vm1123, %v1124, %v1122
      %v1126 = vmul.f32 %v1102, 0.5
      %v1127 = vadd.f32 %v1125, 1.0
      %v1128 = vmul.f32 %v1126, %v1127
      %v1129 = vpack.c.bf16 %v1128, %v1128
      %vm1130 = vcmask 257024
      %1131 = vst.msk [vmem:[%s342] sm:$0xf] %vm1130, %v1129
      %p1132 = scmp.lt.s32.totalorder %s21, 1
      %s1133 = scalar_select %p1132, %s21, 1
      %p1134 = scmp.lt.s32.totalorder %s22, 0
      %s1135 = scalar_select %p1134, %s22, 0
      %s1136 = sadd.s32 %s1135, %s1133
      %s1137 = smul.addr %s1136, 4
      %s1138 = scalar_lea.vmem %s6, %s1137
      // Predicated region
      $region45: #{gxl_conv1d_subsampling2.1} parent=43 // pred_check
        %p1139 = pneg %p195
      $region46: #{gxl_conv1d_subsampling2.1} parent=43 // pred_check_branch
        %1141 = sbr.rel (%p1139) target = $region48
      $region47: #{gxl_conv1d_subsampling2.1} parent=43 // pred_region
        _
      $region48: #{gxl_conv1d_subsampling2.1} parent=43 // pred_fallthru
        _
    $region44: #{gxl_conv1d_subsampling2.1} parent=5 // pred_fallthru
      _
    %p1142 = scmp.le.s32.totalorder 2, %s12
    // Predicated region
    $region49: #{gxl_conv1d_subsampling2.1} parent=5 // pred_check
      %p1143 = pneg %p1142
    $region50: #{gxl_conv1d_subsampling2.1} parent=5 // pred_check_branch
      %1145 = sbr.rel (%p1143) target = $region52
    $region51: #{gxl_conv1d_subsampling2.1} parent=5 // pred_region
      %s1146 = ssub.s32 %s12, 2
      // Predicated region
      $region53: #{gxl_conv1d_subsampling2.1} parent=51 // pred_check
        %p1147 = pneg %p201
      $region54: #{gxl_conv1d_subsampling2.1} parent=51 // pred_check_branch
        %1149 = sbr.rel (%p1147) target = $region56
      $region55: #{gxl_conv1d_subsampling2.1} parent=51 // pred_region
        %p1150 = scmp.lt.s32.totalorder %s23, 1
        %s1151 = scalar_select %p1150, %s23, 1
        %p1152 = scmp.lt.s32.totalorder %s24, 0
        %s1153 = scalar_select %p1152, %s24, 0
        %s1154 = sadd.s32 %s1153, %s1151
        %s1155 = smul.addr %s1154, 4
        %s1156 = scalar_lea.vmem %s6, %s1155
      $region56: #{gxl_conv1d_subsampling2.1} parent=51 // pred_fallthru
        _
    $region52: #{gxl_conv1d_subsampling2.1} parent=5 // pred_fallthru
      _
  $region6: #{gxl_conv1d_subsampling2.1} parent=0 // loop_footer
    %s16 = sadd.s32 1, %s12
  $region7: #{gxl_conv1d_subsampling2.1} parent=0 // loop_footer_branch
    %11 = sbr.rel target = $region3
  $region8: #{gxl_conv1d_subsampling2.1} parent=0 // loop_exit
    _

</llo_original>
